<compile_context>
chip_gen: v6e
topology: v6e:2x2x1
jax: 0.10.0
libtpu: 0.0.40
codegen_flags: <defaults>
</compile_context>

<pallas_src>
import functools

import jax
import jax.numpy as jnp
from jax.experimental import pallas as pl
from jax.experimental.pallas import tpu as pltpu

NUM_FEATURES = 25
NUM_DIM = 74
LANE = 128                 # every feature dim zero-padded to one 128-lane vreg
OUT_WIDTH = 3 * LANE       # [recon | mu | log_var] packed lane-dense

# Row indices into the packed weight / bias slabs.
_L_ENC1, _L_ENC2, _L_MU, _L_LV, _L_DEC1, _L_DEC2, _L_DEC3 = range(7)


def _round_up(n, m):
    return (n + m - 1) // m * m


def _vae_forward_kernel(x_ref, eps_ref, w_ref, b_ref, out_ref):
    """One batch tile of the full VAE forward pass.

    x_ref   : (TB, 128)  f32   input, lanes >= 74 are zero
    eps_ref : (TB, 128)  f32   gaussian noise, lanes >= 25 are zero
    w_ref   : (7, 128, 128) bf16  zero-padded weights, (in, out) layout
    b_ref   : (8, 128)   f32   zero-padded biases (one row per layer)
    out_ref : (TB, 384)  f32   [recon | mu | log_var], each 128-lane aligned
    """
    x = x_ref[...]
    eps = eps_ref[...]

    def dense(a, layer):
        # bf16 MXU matmul with f32 accumulation; bias add stays in f32.
        acc = jnp.dot(a.astype(jnp.bfloat16), w_ref[layer],
                      preferred_element_type=jnp.float32)
        return acc + b_ref[layer:layer + 1, :]

    # ----- encoder -----
    h = jnp.maximum(dense(x, _L_ENC1), 0.0)        # valid lanes 0:100
    h = jnp.maximum(dense(h, _L_ENC2), 0.0)        # valid lanes 0:50
    mu = dense(h, _L_MU)                           # valid lanes 0:25 (rest 0)
    log_var = dense(h, _L_LV)                      # valid lanes 0:25 (rest 0)

    # ----- reparameterize -----  (padded lanes: eps==0, exp(0)==1 -> z stays 0)
    z = mu + eps * jnp.exp(0.5 * log_var)

    # ----- decoder -----
    d = jnp.maximum(dense(z, _L_DEC1), 0.0)        # valid lanes 0:50
    d = jnp.maximum(dense(d, _L_DEC2), 0.0)        # valid lanes 0:100
    recon = jax.nn.sigmoid(dense(d, _L_DEC3))      # valid lanes 0:74

    # Single lane-dense output slab; all stores 128-aligned and unmasked.
    out_ref[:, 0 * LANE:1 * LANE] = recon
    out_ref[:, 1 * LANE:2 * LANE] = mu
    out_ref[:, 2 * LANE:3 * LANE] = log_var


def _pad_w(w):
    fi, fo = w.shape
    return jnp.pad(w, ((0, LANE - fi), (0, LANE - fo)))


def _pad_b(b):
    b = b.reshape(1, -1)
    return jnp.pad(b, ((0, 0), (0, LANE - b.shape[1])))


@functools.partial(jax.jit, static_argnames=("block_rows",))
def vae_forward(x, eps, params, *, block_rows=256):
    """Full VAE forward pass. Returns (reconstruction, mu, log_var)."""
    B = x.shape[0]
    (w1, b1, w2, b2, w3, b3, wd1, bd1, wd2, bd2, wd3, bd3) = params

    # --- pack parameters into two lane-aligned slabs (one DMA each) ---
    weights = jnp.stack([
        _pad_w(w1), _pad_w(w2),
        _pad_w(w3[:, :NUM_FEATURES]), _pad_w(w3[:, NUM_FEATURES:]),
        _pad_w(wd1), _pad_w(wd2), _pad_w(wd3),
    ]).astype(jnp.bfloat16)                                  # (7,128,128) bf16
    biases = jnp.concatenate([
        _pad_b(b1), _pad_b(b2),
        _pad_b(b3[:, :NUM_FEATURES]), _pad_b(b3[:, NUM_FEATURES:]),
        _pad_b(bd1), _pad_b(bd2), _pad_b(bd3),
        jnp.zeros((1, LANE), jnp.float32),                   # unused pad row
    ], axis=0)                                               # (8,128) f32

    # --- pad activations to a lane-dense (B_pad, 128) layout ---
    tb = min(block_rows, _round_up(B, 8))
    b_pad = _round_up(B, tb)
    x_p = jnp.pad(x.astype(jnp.float32),
                  ((0, b_pad - B), (0, LANE - NUM_DIM)))
    eps_p = jnp.pad(eps.astype(jnp.float32),
                    ((0, b_pad - B), (0, LANE - NUM_FEATURES)))

    out = pl.pallas_call(
        _vae_forward_kernel,
        out_shape=jax.ShapeDtypeStruct((b_pad, OUT_WIDTH), jnp.float32),
        grid=(b_pad // tb,),
        in_specs=[
            pl.BlockSpec((tb, LANE), lambda i: (i, 0)),           # x tile
            pl.BlockSpec((tb, LANE), lambda i: (i, 0)),           # eps tile
            pl.BlockSpec((7, LANE, LANE), lambda i: (0, 0, 0)),   # weights (resident)
            pl.BlockSpec((8, LANE), lambda i: (0, 0)),            # biases (resident)
        ],
        out_specs=pl.BlockSpec((tb, OUT_WIDTH), lambda i: (i, 0)),
        compiler_params=pltpu.CompilerParams(
            dimension_semantics=("parallel",),
        ),
    )(x_p, eps_p, weights, biases)

    recon = out[:B, 0:NUM_DIM]
    mu = out[:B, LANE:LANE + NUM_FEATURES]
    log_var = out[:B, 2 * LANE:2 * LANE + NUM_FEATURES]
    return recon, mu, log_var


def init_params(key):
    """Deterministic parameter init. Weights stored as (in, out); biases as (1, out)."""
    dims = [
        (NUM_DIM, 100),            # encoder_layer_1
        (100, 50),                 # encoder_layer_2
        (50, 2 * NUM_FEATURES),    # encoder_layer_3
        (NUM_FEATURES, 50),        # decoder_layer_1
        (50, 100),                 # decoder_layer_2
        (100, NUM_DIM),            # decoder_layer_3
    ]
    params = []
    for i, (fan_in, fan_out) in enumerate(dims):
        kw, kb = jax.random.split(jax.random.fold_in(key, i))
        bound = 1.0 / jnp.sqrt(fan_in)
        w = jax.random.uniform(kw, (fan_in, fan_out), jnp.float32, -bound, bound)
        b = jax.random.uniform(kb, (1, fan_out), jnp.float32, -bound, bound)
        params += [w, b]
    return tuple(params)


if __name__ == "__main__":
    key = jax.random.PRNGKey(0)
    k_x, k_eps, k_p = jax.random.split(key, 3)

    # Not a multiple of the 128-row tile: exercises row padding + a 2-step grid.
    B = 200
    x = jax.random.normal(k_x, (B, NUM_DIM), jnp.float32)
    eps = jax.random.normal(k_eps, (B, NUM_FEATURES), jnp.float32)
    params = init_params(k_p)

    recon, mu, log_var = vae_forward(x, eps, params, block_rows=128)
    jax.block_until_ready((recon, mu, log_var))

    # Pure-JAX f32 reference (kernel uses bf16 MXU dots -> loose tolerance).
    def ref_forward(x, eps, params):
        w1, b1, w2, b2, w3, b3, wd1, bd1, wd2, bd2, wd3, bd3 = params
        h = jax.nn.relu(x @ w1 + b1)
        h = jax.nn.relu(h @ w2 + b2)
        stats = h @ w3 + b3
        mu_r = stats[:, :NUM_FEATURES]
        lv_r = stats[:, NUM_FEATURES:]
        z = mu_r + eps * jnp.exp(0.5 * lv_r)
        d = jax.nn.relu(z @ wd1 + bd1)
        d = jax.nn.relu(d @ wd2 + bd2)
        return jax.nn.sigmoid(d @ wd3 + bd3), mu_r, lv_r

    r_ref, mu_ref, lv_ref = ref_forward(x, eps, params)
    assert recon.shape == (B, NUM_DIM)
    assert mu.shape == (B, NUM_FEATURES) and log_var.shape == (B, NUM_FEATURES)
    assert bool(jnp.isfinite(recon).all())
    assert jnp.allclose(recon, r_ref, atol=2e-2, rtol=2e-2)
    assert jnp.allclose(mu, mu_ref, atol=2e-2, rtol=2e-2)
    assert jnp.allclose(log_var, lv_ref, atol=2e-2, rtol=2e-2)

    print("KERNEL_OK")
</pallas_src>

<mosaic_0001>
module attributes {stable_mosaic.version = 11 : i64} {
  func.func @_vae_forward_kernel(%arg0: i32, %arg1: memref<128x128xf32, #tpu.memory_space<vmem>>, %arg2: memref<128x128xf32, #tpu.memory_space<vmem>>, %arg3: memref<7x128x128xbf16, #tpu.memory_space<vmem>>, %arg4: memref<8x128xf32, #tpu.memory_space<vmem>>, %arg5: memref<128x384xf32, #tpu.memory_space<vmem>>) attributes {dimension_semantics = [#tpu.dimension_semantics<parallel>], iteration_bounds = array<i64: 2>, scalar_prefetch = 0 : i64, scratch_operands = 0 : i64, tpu.core_type = #tpu.core_type<tc>, window_params = [{transform_indices = @transform_0, window_bounds = array<i64: 128, 128>}, {transform_indices = @transform_1, window_bounds = array<i64: 128, 128>}, {pipeline_mode = #tpu.pipeline_mode<synchronous>, transform_indices = @transform_2, window_bounds = array<i64: 7, 128, 128>}, {pipeline_mode = #tpu.pipeline_mode<synchronous>, transform_indices = @transform_3, window_bounds = array<i64: 8, 128>}, {transform_indices = @transform_4, window_bounds = array<i64: 128, 384>}]} {
    %c0 = arith.constant 0 : index
    %c0_0 = arith.constant 0 : index
    %0 = vector.load %arg1[%c0, %c0_0] : memref<128x128xf32, #tpu.memory_space<vmem>>, vector<128x128xf32>
    %c0_1 = arith.constant 0 : index
    %c0_2 = arith.constant 0 : index
    %1 = vector.load %arg2[%c0_1, %c0_2] : memref<128x128xf32, #tpu.memory_space<vmem>>, vector<128x128xf32>
    %2 = arith.truncf %0 : vector<128x128xf32> to vector<128x128xbf16>
    %c0_3 = arith.constant 0 : index
    %c0_4 = arith.constant 0 : index
    %c0_5 = arith.constant 0 : index
    %3 = vector.load %arg3[%c0_3, %c0_4, %c0_5] : memref<7x128x128xbf16, #tpu.memory_space<vmem>>, vector<1x128x128xbf16>
    %4 = vector.shape_cast %3 : vector<1x128x128xbf16> to vector<128x128xbf16>
    %cst = arith.constant dense<0.000000e+00> : vector<128x128xf32>
    %5 = tpu.matmul %2, %4, %cst {dimension_numbers = #tpu.dot_dimension_numbers<[1], [0], [0], [1], [0, 0, 1, 1], [], []>} : vector<128x128xbf16>, vector<128x128xbf16>, vector<128x128xf32> -> vector<128x128xf32>
    %c0_6 = arith.constant 0 : index
    %c0_7 = arith.constant 0 : index
    %6 = vector.load %arg4[%c0_6, %c0_7] : memref<8x128xf32, #tpu.memory_space<vmem>>, vector<1x128xf32>
    %7 = vector.broadcast %6 : vector<1x128xf32> to vector<128x128xf32>
    %8 = arith.addf %5, %7 : vector<128x128xf32>
    %cst_8 = arith.constant 0.000000e+00 : f32
    %9 = vector.broadcast %cst_8 : f32 to vector<128x128xf32>
    %10 = arith.maximumf %8, %9 : vector<128x128xf32>
    %11 = arith.truncf %10 : vector<128x128xf32> to vector<128x128xbf16>
    %c1 = arith.constant 1 : index
    %c0_9 = arith.constant 0 : index
    %c0_10 = arith.constant 0 : index
    %12 = vector.load %arg3[%c1, %c0_9, %c0_10] : memref<7x128x128xbf16, #tpu.memory_space<vmem>>, vector<1x128x128xbf16>
    %13 = vector.shape_cast %12 : vector<1x128x128xbf16> to vector<128x128xbf16>
    %cst_11 = arith.constant dense<0.000000e+00> : vector<128x128xf32>
    %14 = tpu.matmul %11, %13, %cst_11 {dimension_numbers = #tpu.dot_dimension_numbers<[1], [0], [0], [1], [0, 0, 1, 1], [], []>} : vector<128x128xbf16>, vector<128x128xbf16>, vector<128x128xf32> -> vector<128x128xf32>
    %c1_12 = arith.constant 1 : index
    %c0_13 = arith.constant 0 : index
    %15 = vector.load %arg4[%c1_12, %c0_13] : memref<8x128xf32, #tpu.memory_space<vmem>>, vector<1x128xf32>
    %16 = vector.broadcast %15 : vector<1x128xf32> to vector<128x128xf32>
    %17 = arith.addf %14, %16 : vector<128x128xf32>
    %cst_14 = arith.constant 0.000000e+00 : f32
    %18 = vector.broadcast %cst_14 : f32 to vector<128x128xf32>
    %19 = arith.maximumf %17, %18 : vector<128x128xf32>
    %20 = arith.truncf %19 : vector<128x128xf32> to vector<128x128xbf16>
    %c2 = arith.constant 2 : index
    %c0_15 = arith.constant 0 : index
    %c0_16 = arith.constant 0 : index
    %21 = vector.load %arg3[%c2, %c0_15, %c0_16] : memref<7x128x128xbf16, #tpu.memory_space<vmem>>, vector<1x128x128xbf16>
    %22 = vector.shape_cast %21 : vector<1x128x128xbf16> to vector<128x128xbf16>
    %cst_17 = arith.constant dense<0.000000e+00> : vector<128x128xf32>
    %23 = tpu.matmul %20, %22, %cst_17 {dimension_numbers = #tpu.dot_dimension_numbers<[1], [0], [0], [1], [0, 0, 1, 1], [], []>} : vector<128x128xbf16>, vector<128x128xbf16>, vector<128x128xf32> -> vector<128x128xf32>
    %c2_18 = arith.constant 2 : index
    %c0_19 = arith.constant 0 : index
    %24 = vector.load %arg4[%c2_18, %c0_19] : memref<8x128xf32, #tpu.memory_space<vmem>>, vector<1x128xf32>
    %25 = vector.broadcast %24 : vector<1x128xf32> to vector<128x128xf32>
    %26 = arith.addf %23, %25 : vector<128x128xf32>
    %27 = arith.truncf %19 : vector<128x128xf32> to vector<128x128xbf16>
    %c3 = arith.constant 3 : index
    %c0_20 = arith.constant 0 : index
    %c0_21 = arith.constant 0 : index
    %28 = vector.load %arg3[%c3, %c0_20, %c0_21] : memref<7x128x128xbf16, #tpu.memory_space<vmem>>, vector<1x128x128xbf16>
    %29 = vector.shape_cast %28 : vector<1x128x128xbf16> to vector<128x128xbf16>
    %cst_22 = arith.constant dense<0.000000e+00> : vector<128x128xf32>
    %30 = tpu.matmul %27, %29, %cst_22 {dimension_numbers = #tpu.dot_dimension_numbers<[1], [0], [0], [1], [0, 0, 1, 1], [], []>} : vector<128x128xbf16>, vector<128x128xbf16>, vector<128x128xf32> -> vector<128x128xf32>
    %c3_23 = arith.constant 3 : index
    %c0_24 = arith.constant 0 : index
    %31 = vector.load %arg4[%c3_23, %c0_24] : memref<8x128xf32, #tpu.memory_space<vmem>>, vector<1x128xf32>
    %32 = vector.broadcast %31 : vector<1x128xf32> to vector<128x128xf32>
    %33 = arith.addf %30, %32 : vector<128x128xf32>
    %cst_25 = arith.constant 5.000000e-01 : f32
    %34 = vector.broadcast %cst_25 : f32 to vector<128x128xf32>
    %35 = arith.mulf %34, %33 : vector<128x128xf32>
    %36 = math.exp %35 : vector<128x128xf32>
    %37 = arith.mulf %1, %36 : vector<128x128xf32>
    %38 = arith.addf %26, %37 : vector<128x128xf32>
    %39 = arith.truncf %38 : vector<128x128xf32> to vector<128x128xbf16>
    %c4 = arith.constant 4 : index
    %c0_26 = arith.constant 0 : index
    %c0_27 = arith.constant 0 : index
    %40 = vector.load %arg3[%c4, %c0_26, %c0_27] : memref<7x128x128xbf16, #tpu.memory_space<vmem>>, vector<1x128x128xbf16>
    %41 = vector.shape_cast %40 : vector<1x128x128xbf16> to vector<128x128xbf16>
    %cst_28 = arith.constant dense<0.000000e+00> : vector<128x128xf32>
    %42 = tpu.matmul %39, %41, %cst_28 {dimension_numbers = #tpu.dot_dimension_numbers<[1], [0], [0], [1], [0, 0, 1, 1], [], []>} : vector<128x128xbf16>, vector<128x128xbf16>, vector<128x128xf32> -> vector<128x128xf32>
    %c4_29 = arith.constant 4 : index
    %c0_30 = arith.constant 0 : index
    %43 = vector.load %arg4[%c4_29, %c0_30] : memref<8x128xf32, #tpu.memory_space<vmem>>, vector<1x128xf32>
    %44 = vector.broadcast %43 : vector<1x128xf32> to vector<128x128xf32>
    %45 = arith.addf %42, %44 : vector<128x128xf32>
    %cst_31 = arith.constant 0.000000e+00 : f32
    %46 = vector.broadcast %cst_31 : f32 to vector<128x128xf32>
    %47 = arith.maximumf %45, %46 : vector<128x128xf32>
    %48 = arith.truncf %47 : vector<128x128xf32> to vector<128x128xbf16>
    %c5 = arith.constant 5 : index
    %c0_32 = arith.constant 0 : index
    %c0_33 = arith.constant 0 : index
    %49 = vector.load %arg3[%c5, %c0_32, %c0_33] : memref<7x128x128xbf16, #tpu.memory_space<vmem>>, vector<1x128x128xbf16>
    %50 = vector.shape_cast %49 : vector<1x128x128xbf16> to vector<128x128xbf16>
    %cst_34 = arith.constant dense<0.000000e+00> : vector<128x128xf32>
    %51 = tpu.matmul %48, %50, %cst_34 {dimension_numbers = #tpu.dot_dimension_numbers<[1], [0], [0], [1], [0, 0, 1, 1], [], []>} : vector<128x128xbf16>, vector<128x128xbf16>, vector<128x128xf32> -> vector<128x128xf32>
    %c5_35 = arith.constant 5 : index
    %c0_36 = arith.constant 0 : index
    %52 = vector.load %arg4[%c5_35, %c0_36] : memref<8x128xf32, #tpu.memory_space<vmem>>, vector<1x128xf32>
    %53 = vector.broadcast %52 : vector<1x128xf32> to vector<128x128xf32>
    %54 = arith.addf %51, %53 : vector<128x128xf32>
    %cst_37 = arith.constant 0.000000e+00 : f32
    %55 = vector.broadcast %cst_37 : f32 to vector<128x128xf32>
    %56 = arith.maximumf %54, %55 : vector<128x128xf32>
    %57 = arith.truncf %56 : vector<128x128xf32> to vector<128x128xbf16>
    %c6 = arith.constant 6 : index
    %c0_38 = arith.constant 0 : index
    %c0_39 = arith.constant 0 : index
    %58 = vector.load %arg3[%c6, %c0_38, %c0_39] : memref<7x128x128xbf16, #tpu.memory_space<vmem>>, vector<1x128x128xbf16>
    %59 = vector.shape_cast %58 : vector<1x128x128xbf16> to vector<128x128xbf16>
    %cst_40 = arith.constant dense<0.000000e+00> : vector<128x128xf32>
    %60 = tpu.matmul %57, %59, %cst_40 {dimension_numbers = #tpu.dot_dimension_numbers<[1], [0], [0], [1], [0, 0, 1, 1], [], []>} : vector<128x128xbf16>, vector<128x128xbf16>, vector<128x128xf32> -> vector<128x128xf32>
    %c6_41 = arith.constant 6 : index
    %c0_42 = arith.constant 0 : index
    %61 = vector.load %arg4[%c6_41, %c0_42] : memref<8x128xf32, #tpu.memory_space<vmem>>, vector<1x128xf32>
    %62 = vector.broadcast %61 : vector<1x128xf32> to vector<128x128xf32>
    %63 = arith.addf %60, %62 : vector<128x128xf32>
    %64 = arith.negf %63 : vector<128x128xf32>
    %65 = math.exp %64 : vector<128x128xf32>
    %cst_43 = arith.constant 1.000000e+00 : f32
    %66 = vector.broadcast %cst_43 : f32 to vector<128x128xf32>
    %67 = arith.addf %66, %65 : vector<128x128xf32>
    %68 = arith.divf %66, %67 : vector<128x128xf32>
    %c0_44 = arith.constant 0 : index
    %c0_45 = arith.constant 0 : index
    %69 = vector.load %arg5[%c0_44, %c0_45] : memref<128x384xf32, #tpu.memory_space<vmem>>, vector<128x128xf32>
    tpu.vector_store %arg5[%c0_44, %c0_45], %68 {strides = array<i32>} : memref<128x384xf32, #tpu.memory_space<vmem>>, vector<128x128xf32>,
    %c0_46 = arith.constant 0 : index
    %c128 = arith.constant 128 : index
    %70 = vector.load %arg5[%c0_46, %c128] : memref<128x384xf32, #tpu.memory_space<vmem>>, vector<128x128xf32>
    tpu.vector_store %arg5[%c0_46, %c128], %26 {strides = array<i32>} : memref<128x384xf32, #tpu.memory_space<vmem>>, vector<128x128xf32>,
    %c0_47 = arith.constant 0 : index
    %c256 = arith.constant 256 : index
    %71 = vector.load %arg5[%c0_47, %c256] : memref<128x384xf32, #tpu.memory_space<vmem>>, vector<128x128xf32>
    tpu.vector_store %arg5[%c0_47, %c256], %33 {strides = array<i32>} : memref<128x384xf32, #tpu.memory_space<vmem>>, vector<128x128xf32>,
    return
  }
  func.func @transform_0(%arg0: i32) -> (i32, i32) {
    %c0_i32 = arith.constant 0 : i32
    %c0_i32_0 = arith.constant 0 : i32
    return %arg0, %c0_i32 : i32, i32
  }
  func.func @transform_1(%arg0: i32) -> (i32, i32) {
    %c0_i32 = arith.constant 0 : i32
    %c0_i32_0 = arith.constant 0 : i32
    return %arg0, %c0_i32 : i32, i32
  }
  func.func @transform_2(%arg0: i32) -> (i32, i32, i32) {
    %c0_i32 = arith.constant 0 : i32
    %c0_i32_0 = arith.constant 0 : i32
    %c0_i32_1 = arith.constant 0 : i32
    %c0_i32_2 = arith.constant 0 : i32
    return %c0_i32, %c0_i32_0, %c0_i32_1 : i32, i32, i32
  }
  func.func @transform_3(%arg0: i32) -> (i32, i32) {
    %c0_i32 = arith.constant 0 : i32
    %c0_i32_0 = arith.constant 0 : i32
    %c0_i32_1 = arith.constant 0 : i32
    return %c0_i32, %c0_i32_0 : i32, i32
  }
  func.func @transform_4(%arg0: i32) -> (i32, i32) {
    %c0_i32 = arith.constant 0 : i32
    %c0_i32_0 = arith.constant 0 : i32
    return %arg0, %c0_i32 : i32, i32
  }
}

</mosaic_0001>

<llo_original>
// kernel: vae_forward.1
$region0: #{vae_forward.1}
  #allocation0 [shape = 'u32[]', space=smem, size = 0x4, offset = 0x4, fixed_abs, tag = 'smem constant byte address 0x4 - core index']
  #allocation1 [shape = 'u32[144,128]{1,0:T(1,128)}', space=vmem, size = 0x12000, scoped, tag = 'internal scratch']
  %s0 = inlined_call_operand.vmem [shape: f32[256,128], index: 0, kind: input, shape index: {}]
  %s1 = inlined_call_operand.vmem [shape: f32[256,128], index: 1, kind: input, shape index: {}]
  %s2 = inlined_call_operand.vmem [shape: bf16[7,128,128], index: 2, kind: input, shape index: {}]
  %s3 = inlined_call_operand.vmem [shape: f32[8,128], index: 3, kind: input, shape index: {}]
  %s4 = inlined_call_operand.vmem [shape: f32[256,384], index: 4, kind: output, shape index: {}]
  %s5 = sld [smem:[#allocation0]]
  $region49: #{vae_forward.1} parent=0
    _
  %s7 = ssub.s32 1, %s5
  %s8 = scalar_select 0, %s7, %s5
  loop: start=0, step=1, limit=4
  $region2: #{vae_forward.1} parent=0 // loop_pre_header
    _
  $region3: #{vae_forward.1} parent=0 // loop_header
    %s10 = sphi 0, %s14
    %p11 = scmp.ge.s32.totalorder %s10, 4
    %s20 = sphi 0, %s22
    %s23 = sphi 0, %s20
    %s24 = sphi 0, %s23
    %s40 = sphi 0, %s24
    %s46 = sphi 0, %s48
    %s49 = sphi 0, %s46
    %s50 = sphi 0, %s49
    %s66 = sphi 0, %s50
    %s70 = sphi 0, %s70
    %s72 = sphi 0, %s70
    %s73 = sphi 0, %s72
    %s87 = sphi 0, %s73
    %s91 = sphi 0, %s91
    %s93 = sphi 0, %s91
    %s94 = sphi 0, %s93
    %s108 = sphi 0, %s94
    %s114 = sphi 0, %s116
    %s117 = sphi 0, %s114
    %s118 = sphi 0, %s117
    %s134 = sphi 0, %s118
  $region4: #{vae_forward.1} parent=0 // loop_header_branch
    %13 = sbr.rel (%p11) target = $region8
  $region5: #{vae_forward.1} parent=0 // loop_body
    %s15 = ssub.s32 %s10, 1
    %s16 = ssub.s32 %s10, 2
    %s17 = sadd.s32 %s10, 1
    %s18 = ssub.s32 %s10, %s17
    %p19 = scmp.eq.s32.totalorder %s18, 0
    %s21 = sadd.s32 %s20, 1
    %s22 = scalar_select %p19, %s20, %s21
    %p25 = pneg %p19
    %p26 = scmp.eq.s32.totalorder %s10, 1
    %p27 = por %p25, %p26
    %p28 = scmp.ne.s32.totalorder %s20, %s23
    %p29 = scmp.eq.s32.totalorder %s10, 0
    %p30 = por %p28, %p29
    %p31 = scmp.ne.s32.totalorder %s20, %s23
    %p32 = scmp.eq.s32.totalorder %s15, 1
    %p33 = por %p31, %p32
    %p34 = scmp.ne.s32.totalorder %s23, %s24
    %p35 = scmp.eq.s32.totalorder %s15, 0
    %p36 = por %p34, %p35
    %p37 = scmp.ne.s32.totalorder %s23, %s24
    %p38 = scmp.eq.s32.totalorder %s16, 1
    %p39 = por %p37, %p38
    %p41 = scmp.ne.s32.totalorder %s24, %s40
    %p42 = scmp.eq.s32.totalorder %s16, 0
    %p43 = por %p41, %p42
    %s44 = ssub.s32 %s10, %s17
    %p45 = scmp.eq.s32.totalorder %s44, 0
    %s47 = sadd.s32 %s46, 1
    %s48 = scalar_select %p45, %s46, %s47
    %p51 = pneg %p45
    %p52 = scmp.eq.s32.totalorder %s10, 1
    %p53 = por %p51, %p52
    %p54 = scmp.ne.s32.totalorder %s46, %s49
    %p55 = scmp.eq.s32.totalorder %s10, 0
    %p56 = por %p54, %p55
    %p57 = scmp.ne.s32.totalorder %s46, %s49
    %p58 = scmp.eq.s32.totalorder %s15, 1
    %p59 = por %p57, %p58
    %p60 = scmp.ne.s32.totalorder %s49, %s50
    %p61 = scmp.eq.s32.totalorder %s15, 0
    %p62 = por %p60, %p61
    %p63 = scmp.ne.s32.totalorder %s49, %s50
    %p64 = scmp.eq.s32.totalorder %s16, 1
    %p65 = por %p63, %p64
    %p67 = scmp.ne.s32.totalorder %s50, %s66
    %p68 = scmp.eq.s32.totalorder %s16, 0
    %p69 = por %p67, %p68
    %s71 = sadd.s32 %s70, 1
    %p74 = scmp.eq.s32.totalorder %s10, 1
    %p75 = scmp.ne.s32.totalorder %s70, %s72
    %p76 = scmp.eq.s32.totalorder %s10, 0
    %p77 = por %p75, %p76
    %p78 = scmp.ne.s32.totalorder %s70, %s72
    %p79 = scmp.eq.s32.totalorder %s15, 1
    %p80 = por %p78, %p79
    %p81 = scmp.ne.s32.totalorder %s72, %s73
    %p82 = scmp.eq.s32.totalorder %s15, 0
    %p83 = por %p81, %p82
    %p84 = scmp.ne.s32.totalorder %s72, %s73
    %p85 = scmp.eq.s32.totalorder %s16, 1
    %p86 = por %p84, %p85
    %p88 = scmp.ne.s32.totalorder %s73, %s87
    %p89 = scmp.eq.s32.totalorder %s16, 0
    %p90 = por %p88, %p89
    %s92 = sadd.s32 %s91, 1
    %p95 = scmp.eq.s32.totalorder %s10, 1
    %p96 = scmp.ne.s32.totalorder %s91, %s93
    %p97 = scmp.eq.s32.totalorder %s10, 0
    %p98 = por %p96, %p97
    %p99 = scmp.ne.s32.totalorder %s91, %s93
    %p100 = scmp.eq.s32.totalorder %s15, 1
    %p101 = por %p99, %p100
    %p102 = scmp.ne.s32.totalorder %s93, %s94
    %p103 = scmp.eq.s32.totalorder %s15, 0
    %p104 = por %p102, %p103
    %p105 = scmp.ne.s32.totalorder %s93, %s94
    %p106 = scmp.eq.s32.totalorder %s16, 1
    %p107 = por %p105, %p106
    %p109 = scmp.ne.s32.totalorder %s94, %s108
    %p110 = scmp.eq.s32.totalorder %s16, 0
    %p111 = por %p109, %p110
    %s112 = ssub.s32 %s10, %s17
    %p113 = scmp.eq.s32.totalorder %s112, 0
    %s115 = sadd.s32 %s114, 1
    %s116 = scalar_select %p113, %s114, %s115
    %p119 = pneg %p113
    %p120 = scmp.eq.s32.totalorder %s10, 1
    %p121 = por %p119, %p120
    %p122 = scmp.ne.s32.totalorder %s114, %s117
    %p123 = scmp.eq.s32.totalorder %s10, 0
    %p124 = por %p122, %p123
    %p125 = scmp.ne.s32.totalorder %s114, %s117
    %p126 = scmp.eq.s32.totalorder %s15, 1
    %p127 = por %p125, %p126
    %p128 = scmp.ne.s32.totalorder %s117, %s118
    %p129 = scmp.eq.s32.totalorder %s15, 0
    %p130 = por %p128, %p129
    %p131 = scmp.ne.s32.totalorder %s117, %s118
    %p132 = scmp.eq.s32.totalorder %s16, 1
    %p133 = por %p131, %p132
    %p135 = scmp.ne.s32.totalorder %s118, %s134
    %p136 = scmp.eq.s32.totalorder %s16, 0
    %p137 = por %p135, %p136
    %p138 = scmp.le.s32.totalorder 1, %s10
    %p139 = scmp.lt.s32.totalorder %s10, 3
    %p140 = pnand %p138, %p139
    %p141 = pneg %p140
    // Predicated region
    $region9: #{vae_forward.1} parent=5 // pred_check
      _
    $region10: #{vae_forward.1} parent=5 // pred_check_branch
      %143 = sbr.rel (%p140) target = $region12
    $region11: #{vae_forward.1} parent=5 // pred_region
      %s144 = ssub.s32 %s10, 1
      // Predicated region
      $region13: #{vae_forward.1} parent=11 // pred_check
        %p145 = pneg %p83
      $region14: #{vae_forward.1} parent=11 // pred_check_branch
        %147 = sbr.rel (%p145) target = $region16
      $region15: #{vae_forward.1} parent=11 // pred_region
        _
      $region16: #{vae_forward.1} parent=11 // pred_fallthru
        _
      // Predicated region
      $region17: #{vae_forward.1} parent=11 // pred_check
        %p148 = pneg %p104
      $region18: #{vae_forward.1} parent=11 // pred_check_branch
        %150 = sbr.rel (%p148) target = $region20
      $region19: #{vae_forward.1} parent=11 // pred_region
        _
      $region20: #{vae_forward.1} parent=11 // pred_fallthru
        _
    $region12: #{vae_forward.1} parent=5 // pred_fallthru
      _
    %p151 = scmp.lt.s32.totalorder %s10, 2
    // Predicated region
    $region21: #{vae_forward.1} parent=5 // pred_check
      %p152 = pneg %p151
    $region22: #{vae_forward.1} parent=5 // pred_check_branch
      %154 = sbr.rel (%p152) target = $region24
    $region23: #{vae_forward.1} parent=5 // pred_region
      // Predicated region
      $region25: #{vae_forward.1} parent=23 // pred_check
        %p155 = pneg %p30
      $region26: #{vae_forward.1} parent=23 // pred_check_branch
        %157 = sbr.rel (%p155) target = $region28
      $region27: #{vae_forward.1} parent=23 // pred_region
        %s158 = smul.u32 16, %s10
        %p159 = scmp.lt.s32.totalorder %s158, 31
        %s160 = scalar_select %p159, %s158, 31
        %s161 = smul.addr %s160, 8
        %s162 = scalar_lea.vmem %s0, %s161
        %s163 = smul.u32 16, %s10
      $region28: #{vae_forward.1} parent=23 // pred_fallthru
        _
      // Predicated region
      $region29: #{vae_forward.1} parent=23 // pred_check
        %p164 = pneg %p56
      $region30: #{vae_forward.1} parent=23 // pred_check_branch
        %166 = sbr.rel (%p164) target = $region32
      $region31: #{vae_forward.1} parent=23 // pred_region
        %s167 = smul.u32 16, %s10
        %p168 = scmp.lt.s32.totalorder %s167, 31
        %s169 = scalar_select %p168, %s167, 31
        %s170 = smul.addr %s169, 8
        %s171 = scalar_lea.vmem %s1, %s170
        %s172 = smul.u32 16, %s10
      $region32: #{vae_forward.1} parent=23 // pred_fallthru
        _
    $region24: #{vae_forward.1} parent=5 // pred_fallthru
      _
    %p173 = scmp.le.s32.totalorder 1, %s10
    %p174 = scmp.lt.s32.totalorder %s10, 3
    %p175 = pnand %p173, %p174
    %p176 = pneg %p175
    // Predicated region
    $region33: #{vae_forward.1} parent=5 // pred_check
      _
    $region34: #{vae_forward.1} parent=5 // pred_check_branch
      %178 = sbr.rel (%p175) target = $region36
    $region35: #{vae_forward.1} parent=5 // pred_region
      %s179 = ssub.s32 %s10, 1
      %s180 = smul.u32 16, %s15
      %p181 = scmp.lt.s32.totalorder %s180, 31
      %s182 = scalar_select %p181, %s180, 31
      %s183 = smul.addr %s182, 8
      %s184 = scalar_lea.vmem %s0, %s183
      %p185 = pneg %p36
      %p186 = pneg %p33
      %s187 = smul.u32 16, %s15
      %p188 = scmp.lt.s32.totalorder %s187, 31
      %s189 = scalar_select %p188, %s187, 31
      %s190 = smul.addr %s189, 8
      %s191 = scalar_lea.vmem %s1, %s190
      %p192 = pneg %p62
      %p193 = pneg %p59
      %p194 = pneg %p83
      %p195 = pneg %p80
      %p196 = pneg %p104
      %p197 = pneg %p101
      %p198 = pneg %p130
      %p199 = pneg %p127
      %s200 = smul.u32 16, %s15
      %p201 = scmp.lt.s32.totalorder %s200, 31
      %s202 = scalar_select %p201, %s200, 31
      %s203 = smul.addr %s202, 3
      %s204 = smul.addr %s203, 8
      %s205 = scalar_lea.vmem %s4, %s204
      %s206 = smul.u32 16, %s15
      %p207 = scmp.lt.s32.totalorder %s206, 31
      %s208 = scalar_select %p207, %s206, 31
      %s209 = smul.addr %s208, 8
      %s210 = scalar_lea.vmem %s0, %s209
      %s211 = smul.u32 16, %s15
      %s212 = smul.u32 16, %s15
      %p213 = scmp.lt.s32.totalorder %s212, 31
      %s214 = scalar_select %p213, %s212, 31
      %s215 = smul.addr %s214, 8
      %s216 = scalar_lea.vmem %s1, %s215
      %s217 = smul.u32 16, %s15
      %s218 = smul.u32 16, %s15
      %p219 = scmp.lt.s32.totalorder %s218, 31
      %s220 = scalar_select %p219, %s218, 31
      %s221 = smul.addr %s220, 3
      %s222 = smul.addr %s221, 8
      %s223 = scalar_lea.vmem %s4, %s222
      %s224 = smul.u32 16, %s15
      %v226 = vld [vmem:[%s210] sm:$0xff]
      %v227 = vld [vmem:[%s210 + $0x8] sm:$0xff]
      %v228 = vld [vmem:[%s210 + $0x10] sm:$0xff]
      %v229 = vld [vmem:[%s210 + $0x18] sm:$0xff]
      %v230 = vld [vmem:[%s210 + $0x20] sm:$0xff]
      %v231 = vld [vmem:[%s210 + $0x28] sm:$0xff]
      %v232 = vld [vmem:[%s210 + $0x30] sm:$0xff]
      %v233 = vld [vmem:[%s210 + $0x38] sm:$0xff]
      %v234 = vld [vmem:[%s210 + $0x40] sm:$0xff]
      %v235 = vld [vmem:[%s210 + $0x48] sm:$0xff]
      %v236 = vld [vmem:[%s210 + $0x50] sm:$0xff]
      %v237 = vld [vmem:[%s210 + $0x58] sm:$0xff]
      %v238 = vld [vmem:[%s210 + $0x60] sm:$0xff]
      %v239 = vld [vmem:[%s210 + $0x68] sm:$0xff]
      %v240 = vld [vmem:[%s210 + $0x70] sm:$0xff]
      %v241 = vld [vmem:[%s210 + $0x78] sm:$0xff]
      %v242 = vld [vmem:[%s216] sm:$0xff]
      %v243 = vld [vmem:[%s216 + $0x8] sm:$0xff]
      %v244 = vld [vmem:[%s216 + $0x10] sm:$0xff]
      %v245 = vld [vmem:[%s216 + $0x18] sm:$0xff]
      %v246 = vld [vmem:[%s216 + $0x20] sm:$0xff]
      %v247 = vld [vmem:[%s216 + $0x28] sm:$0xff]
      %v248 = vld [vmem:[%s216 + $0x30] sm:$0xff]
      %v249 = vld [vmem:[%s216 + $0x38] sm:$0xff]
      %v250 = vld [vmem:[%s216 + $0x40] sm:$0xff]
      %v251 = vld [vmem:[%s216 + $0x48] sm:$0xff]
      %v252 = vld [vmem:[%s216 + $0x50] sm:$0xff]
      %v253 = vld [vmem:[%s216 + $0x58] sm:$0xff]
      %v254 = vld [vmem:[%s216 + $0x60] sm:$0xff]
      %v255 = vld [vmem:[%s216 + $0x68] sm:$0xff]
      %v256 = vld [vmem:[%s216 + $0x70] sm:$0xff]
      %v257 = vld [vmem:[%s216 + $0x78] sm:$0xff]
      %v258 = vpack.c.bf16 %v227, %v226
      %v259 = vpack.c.bf16 %v229, %v228
      %v260 = vpack.c.bf16 %v231, %v230
      %v261 = vpack.c.bf16 %v233, %v232
      %v262 = vpack.c.bf16 %v235, %v234
      %v263 = vpack.c.bf16 %v237, %v236
      %v264 = vpack.c.bf16 %v239, %v238
      %v265 = vpack.c.bf16 %v241, %v240
      %v266 = vld [vmem:[%s2] sm:$0xf]
      %v267 = vld [vmem:[%s2 + $0x4] sm:$0xf]
      %v268 = vld [vmem:[%s2 + $0x8] sm:$0xf]
      %v269 = vld [vmem:[%s2 + $0xc] sm:$0xf]
      %v270 = vld [vmem:[%s2 + $0x10] sm:$0xf]
      %v271 = vld [vmem:[%s2 + $0x14] sm:$0xf]
      %v272 = vld [vmem:[%s2 + $0x18] sm:$0xf]
      %v273 = vld [vmem:[%s2 + $0x1c] sm:$0xf]
      %v274 = vld [vmem:[%s2 + $0x20] sm:$0xf]
      %v275 = vld [vmem:[%s2 + $0x24] sm:$0xf]
      %v276 = vld [vmem:[%s2 + $0x28] sm:$0xf]
      %v277 = vld [vmem:[%s2 + $0x2c] sm:$0xf]
      %v278 = vld [vmem:[%s2 + $0x30] sm:$0xf]
      %v279 = vld [vmem:[%s2 + $0x34] sm:$0xf]
      %v280 = vld [vmem:[%s2 + $0x38] sm:$0xf]
      %v281 = vld [vmem:[%s2 + $0x3c] sm:$0xf]
      %v282 = vld [vmem:[%s3] sm:$0x1]
      %v283 = vlaneseq
      %v284 = vshrl.u32 %v283, 7
      %v285 = vsub.s32 0, %v284
      %v286 = vrot.slane %v282, %v285
      %v303 = vunpack.c.l.b16 %v266
      %v304 = vunpack.c.l.b16 %v267
      %v305 = vunpack.c.l.b16 %v268
      %v306 = vunpack.c.l.b16 %v269
      %v307 = vunpack.c.l.b16 %v270
      %v308 = vunpack.c.l.b16 %v271
      %v309 = vunpack.c.l.b16 %v272
      %v310 = vunpack.c.l.b16 %v273
      %v311 = vunpack.c.l.b16 %v274
      %v312 = vunpack.c.l.b16 %v275
      %v313 = vunpack.c.l.b16 %v276
      %v314 = vunpack.c.l.b16 %v277
      %v315 = vunpack.c.l.b16 %v278
      %v316 = vunpack.c.l.b16 %v279
      %v317 = vunpack.c.l.b16 %v280
      %v318 = vunpack.c.l.b16 %v281
      %v319 = vpack.c.b16 %v304, %v303
      %v320 = vpack.c.b16 %v306, %v305
      %v321 = vpack.c.b16 %v308, %v307
      %v322 = vpack.c.b16 %v310, %v309
      %v323 = vpack.c.b16 %v312, %v311
      %v324 = vpack.c.b16 %v314, %v313
      %v325 = vpack.c.b16 %v316, %v315
      %v326 = vpack.c.b16 %v318, %v317
      %335 = vmatprep.subr.bf16.mxu0 0
      %336 = vmatpush1.bf16.msra.mxu0 %v326
      %337 = vmatprep.subr.bf16.mxu0 0
      %338 = vmatpush1.bf16.msra.mxu0 %v325
      %339 = vmatprep.subr.bf16.mxu0 0
      %340 = vmatpush1.bf16.msra.mxu0 %v324
      %341 = vmatprep.subr.bf16.mxu0 0
      %342 = vmatpush1.bf16.msra.mxu0 %v323
      %343 = vmatprep.subr.bf16.mxu0 0
      %344 = vmatpush1.bf16.msra.mxu0 %v322
      %345 = vmatprep.subr.bf16.mxu0 0
      %346 = vmatpush1.bf16.msra.mxu0 %v321
      %347 = vmatprep.subr.bf16.mxu0 0
      %348 = vmatpush1.bf16.msra.mxu0 %v320
      %349 = vmatprep.subr.bf16.mxu0 0
      %350 = vmatpush1.bf16.msra.mxu0 %v319
      %351 = vmatprep.subr.bf16.mxu0 0
      %352 = vmatpush2.bf16.msra.mxu0 0
      %353 = vmatprep.subr.bf16.mxu0 0
      %354 = vmatpush2.bf16.msra.mxu0 0
      %355 = vmatprep.subr.bf16.mxu0 0
      %356 = vmatpush2.bf16.msra.mxu0 0
      %357 = vmatprep.subr.bf16.mxu0 0
      %358 = vmatpush2.bf16.msra.mxu0 0
      %359 = vmatprep.subr.bf16.mxu0 0
      %360 = vmatpush2.bf16.msra.mxu0 0
      %361 = vmatprep.subr.bf16.mxu0 0
      %362 = vmatpush2.bf16.msra.mxu0 0
      %363 = vmatprep.subr.bf16.mxu0 0
      %364 = vmatpush2.bf16.msra.mxu0 0
      %365 = vmatprep.subr.bf16.mxu0 0
      %366 = vmatpush2.bf16.msra.mxu0 0
      %367 = vmatprep.mubr.bf16.mxu0 0
      %368 = vmatmul.mubr.bf16.gmra.mxu0 %v258
      %v369 = vpop.f32.mrf.mxu0
      %v370 = vadd.f32 %v286, %v369
      %v371 = vpop.f32.mrf.mxu0
      %v372 = vpop.f32.mrf.mxu0
      %v373 = vadd.f32 %v286, %v372
      %v374 = vpop.f32.mrf.mxu0
      %375 = vmatprep.mubr.bf16.mxu0 0
      %376 = vmatmul.mubr.bf16.gmra.mxu0 %v259
      %v377 = vpop.f32.mrf.mxu0
      %v378 = vadd.f32 %v286, %v377
      %v379 = vpop.f32.mrf.mxu0
      %v380 = vpop.f32.mrf.mxu0
      %v381 = vadd.f32 %v286, %v380
      %v382 = vpop.f32.mrf.mxu0
      %383 = vmatprep.mubr.bf16.mxu0 0
      %384 = vmatmul.mubr.bf16.gmra.mxu0 %v260
      %v385 = vpop.f32.mrf.mxu0
      %v386 = vadd.f32 %v286, %v385
      %v387 = vpop.f32.mrf.mxu0
      %v388 = vpop.f32.mrf.mxu0
      %v389 = vadd.f32 %v286, %v388
      %v390 = vpop.f32.mrf.mxu0
      %391 = vmatprep.mubr.bf16.mxu0 0
      %392 = vmatmul.mubr.bf16.gmra.mxu0 %v261
      %v393 = vpop.f32.mrf.mxu0
      %v394 = vadd.f32 %v286, %v393
      %v395 = vpop.f32.mrf.mxu0
      %v396 = vpop.f32.mrf.mxu0
      %v397 = vadd.f32 %v286, %v396
      %v398 = vpop.f32.mrf.mxu0
      %399 = vmatprep.mubr.bf16.mxu0 0
      %400 = vmatmul.mubr.bf16.gmra.mxu0 %v262
      %v401 = vpop.f32.mrf.mxu0
      %v402 = vadd.f32 %v286, %v401
      %v403 = vpop.f32.mrf.mxu0
      %v404 = vpop.f32.mrf.mxu0
      %v405 = vadd.f32 %v286, %v404
      %v406 = vpop.f32.mrf.mxu0
      %407 = vmatprep.mubr.bf16.mxu0 0
      %408 = vmatmul.mubr.bf16.gmra.mxu0 %v263
      %v409 = vpop.f32.mrf.mxu0
      %v410 = vadd.f32 %v286, %v409
      %v411 = vpop.f32.mrf.mxu0
      %v412 = vpop.f32.mrf.mxu0
      %v413 = vadd.f32 %v286, %v412
      %v414 = vpop.f32.mrf.mxu0
      %415 = vmatprep.mubr.bf16.mxu0 0
      %416 = vmatmul.mubr.bf16.gmra.mxu0 %v264
      %v417 = vpop.f32.mrf.mxu0
      %v418 = vadd.f32 %v286, %v417
      %v419 = vpop.f32.mrf.mxu0
      %v420 = vpop.f32.mrf.mxu0
      %v421 = vadd.f32 %v286, %v420
      %v422 = vpop.f32.mrf.mxu0
      %423 = vmatprep.mubr.bf16.mxu0 0
      %424 = vmatmul.mubr.bf16.gmra.mxu0 %v265
      %v425 = vpop.f32.mrf.mxu0
      %v426 = vadd.f32 %v286, %v425
      %v427 = vpop.f32.mrf.mxu0
      %v428 = vpop.f32.mrf.mxu0
      %v429 = vadd.f32 %v286, %v428
      %v430 = vpop.f32.mrf.mxu0
      %431 = vdwg.mxu0
      %v432 = vmax.f32 %v370, 0.0
      %v433 = vmax.f32 %v373, 0.0
      %v434 = vmax.f32 %v378, 0.0
      %v435 = vmax.f32 %v381, 0.0
      %v436 = vmax.f32 %v386, 0.0
      %v437 = vmax.f32 %v389, 0.0
      %v438 = vmax.f32 %v394, 0.0
      %v439 = vmax.f32 %v397, 0.0
      %v440 = vmax.f32 %v402, 0.0
      %v441 = vmax.f32 %v405, 0.0
      %v442 = vmax.f32 %v410, 0.0
      %v443 = vmax.f32 %v413, 0.0
      %v444 = vmax.f32 %v418, 0.0
      %v445 = vmax.f32 %v421, 0.0
      %v446 = vmax.f32 %v426, 0.0
      %v447 = vmax.f32 %v429, 0.0
      %v448 = vpack.c.bf16 %v433, %v432
      %v449 = vpack.c.bf16 %v435, %v434
      %v450 = vpack.c.bf16 %v437, %v436
      %v451 = vpack.c.bf16 %v439, %v438
      %v452 = vpack.c.bf16 %v441, %v440
      %v453 = vpack.c.bf16 %v443, %v442
      %v454 = vpack.c.bf16 %v445, %v444
      %v455 = vpack.c.bf16 %v447, %v446
      %s456 = scalar_lea.vmem %s2, 64
      %v457 = vld [vmem:[%s456] sm:$0xf]
      %v458 = vld [vmem:[%s456 + $0x4] sm:$0xf]
      %v459 = vld [vmem:[%s456 + $0x8] sm:$0xf]
      %v460 = vld [vmem:[%s456 + $0xc] sm:$0xf]
      %v461 = vld [vmem:[%s456 + $0x10] sm:$0xf]
      %v462 = vld [vmem:[%s456 + $0x14] sm:$0xf]
      %v463 = vld [vmem:[%s456 + $0x18] sm:$0xf]
      %v464 = vld [vmem:[%s456 + $0x1c] sm:$0xf]
      %v465 = vld [vmem:[%s456 + $0x20] sm:$0xf]
      %v466 = vld [vmem:[%s456 + $0x24] sm:$0xf]
      %v467 = vld [vmem:[%s456 + $0x28] sm:$0xf]
      %v468 = vld [vmem:[%s456 + $0x2c] sm:$0xf]
      %v469 = vld [vmem:[%s456 + $0x30] sm:$0xf]
      %v470 = vld [vmem:[%s456 + $0x34] sm:$0xf]
      %v471 = vld [vmem:[%s456 + $0x38] sm:$0xf]
      %v472 = vld [vmem:[%s456 + $0x3c] sm:$0xf]
      %v473 = vld [vmem:[%s3 + $0x1] sm:$0x1]
      %v474 = vlaneseq
      %v475 = vshrl.u32 %v474, 7
      %v476 = vsub.s32 0, %v475
      %v477 = vrot.slane %v473, %v476
      %v494 = vunpack.c.l.b16 %v457
      %v495 = vunpack.c.l.b16 %v458
      %v496 = vunpack.c.l.b16 %v459
      %v497 = vunpack.c.l.b16 %v460
      %v498 = vunpack.c.l.b16 %v461
      %v499 = vunpack.c.l.b16 %v462
      %v500 = vunpack.c.l.b16 %v463
      %v501 = vunpack.c.l.b16 %v464
      %v502 = vunpack.c.l.b16 %v465
      %v503 = vunpack.c.l.b16 %v466
      %v504 = vunpack.c.l.b16 %v467
      %v505 = vunpack.c.l.b16 %v468
      %v506 = vunpack.c.l.b16 %v469
      %v507 = vunpack.c.l.b16 %v470
      %v508 = vunpack.c.l.b16 %v471
      %v509 = vunpack.c.l.b16 %v472
      %v510 = vpack.c.b16 %v495, %v494
      %v511 = vpack.c.b16 %v497, %v496
      %v512 = vpack.c.b16 %v499, %v498
      %v513 = vpack.c.b16 %v501, %v500
      %v514 = vpack.c.b16 %v503, %v502
      %v515 = vpack.c.b16 %v505, %v504
      %v516 = vpack.c.b16 %v507, %v506
      %v517 = vpack.c.b16 %v509, %v508
      %526 = vmatprep.subr.bf16.mxu0 0
      %527 = vmatpush1.bf16.msra.mxu0 %v517
      %528 = vmatprep.subr.bf16.mxu0 0
      %529 = vmatpush1.bf16.msra.mxu0 %v516
      %530 = vmatprep.subr.bf16.mxu0 0
      %531 = vmatpush1.bf16.msra.mxu0 %v515
      %532 = vmatprep.subr.bf16.mxu0 0
      %533 = vmatpush1.bf16.msra.mxu0 %v514
      %534 = vmatprep.subr.bf16.mxu0 0
      %535 = vmatpush1.bf16.msra.mxu0 %v513
      %536 = vmatprep.subr.bf16.mxu0 0
      %537 = vmatpush1.bf16.msra.mxu0 %v512
      %538 = vmatprep.subr.bf16.mxu0 0
      %539 = vmatpush1.bf16.msra.mxu0 %v511
      %540 = vmatprep.subr.bf16.mxu0 0
      %541 = vmatpush1.bf16.msra.mxu0 %v510
      %542 = vmatprep.subr.bf16.mxu0 0
      %543 = vmatpush2.bf16.msra.mxu0 0
      %544 = vmatprep.subr.bf16.mxu0 0
      %545 = vmatpush2.bf16.msra.mxu0 0
      %546 = vmatprep.subr.bf16.mxu0 0
      %547 = vmatpush2.bf16.msra.mxu0 0
      %548 = vmatprep.subr.bf16.mxu0 0
      %549 = vmatpush2.bf16.msra.mxu0 0
      %550 = vmatprep.subr.bf16.mxu0 0
      %551 = vmatpush2.bf16.msra.mxu0 0
      %552 = vmatprep.subr.bf16.mxu0 0
      %553 = vmatpush2.bf16.msra.mxu0 0
      %554 = vmatprep.subr.bf16.mxu0 0
      %555 = vmatpush2.bf16.msra.mxu0 0
      %556 = vmatprep.subr.bf16.mxu0 0
      %557 = vmatpush2.bf16.msra.mxu0 0
      %558 = vmatprep.mubr.bf16.mxu0 0
      %559 = vmatmul.mubr.bf16.gmra.mxu0 %v448
      %v560 = vpop.f32.mrf.mxu0
      %v561 = vadd.f32 %v477, %v560
      %v562 = vpop.f32.mrf.mxu0
      %v563 = vpop.f32.mrf.mxu0
      %v564 = vadd.f32 %v477, %v563
      %v565 = vpop.f32.mrf.mxu0
      %566 = vmatprep.mubr.bf16.mxu0 0
      %567 = vmatmul.mubr.bf16.gmra.mxu0 %v449
      %v568 = vpop.f32.mrf.mxu0
      %v569 = vadd.f32 %v477, %v568
      %v570 = vpop.f32.mrf.mxu0
      %v571 = vpop.f32.mrf.mxu0
      %v572 = vadd.f32 %v477, %v571
      %v573 = vpop.f32.mrf.mxu0
      %574 = vmatprep.mubr.bf16.mxu0 0
      %575 = vmatmul.mubr.bf16.gmra.mxu0 %v450
      %v576 = vpop.f32.mrf.mxu0
      %v577 = vadd.f32 %v477, %v576
      %v578 = vpop.f32.mrf.mxu0
      %v579 = vpop.f32.mrf.mxu0
      %v580 = vadd.f32 %v477, %v579
      %v581 = vpop.f32.mrf.mxu0
      %582 = vmatprep.mubr.bf16.mxu0 0
      %583 = vmatmul.mubr.bf16.gmra.mxu0 %v451
      %v584 = vpop.f32.mrf.mxu0
      %v585 = vadd.f32 %v477, %v584
      %v586 = vpop.f32.mrf.mxu0
      %v587 = vpop.f32.mrf.mxu0
      %v588 = vadd.f32 %v477, %v587
      %v589 = vpop.f32.mrf.mxu0
      %590 = vmatprep.mubr.bf16.mxu0 0
      %591 = vmatmul.mubr.bf16.gmra.mxu0 %v452
      %v592 = vpop.f32.mrf.mxu0
      %v593 = vadd.f32 %v477, %v592
      %v594 = vpop.f32.mrf.mxu0
      %v595 = vpop.f32.mrf.mxu0
      %v596 = vadd.f32 %v477, %v595
      %v597 = vpop.f32.mrf.mxu0
      %598 = vmatprep.mubr.bf16.mxu0 0
      %599 = vmatmul.mubr.bf16.gmra.mxu0 %v453
      %v600 = vpop.f32.mrf.mxu0
      %v601 = vadd.f32 %v477, %v600
      %v602 = vpop.f32.mrf.mxu0
      %v603 = vpop.f32.mrf.mxu0
      %v604 = vadd.f32 %v477, %v603
      %v605 = vpop.f32.mrf.mxu0
      %606 = vmatprep.mubr.bf16.mxu0 0
      %607 = vmatmul.mubr.bf16.gmra.mxu0 %v454
      %v608 = vpop.f32.mrf.mxu0
      %v609 = vadd.f32 %v477, %v608
      %v610 = vpop.f32.mrf.mxu0
      %v611 = vpop.f32.mrf.mxu0
      %v612 = vadd.f32 %v477, %v611
      %v613 = vpop.f32.mrf.mxu0
      %614 = vmatprep.mubr.bf16.mxu0 0
      %615 = vmatmul.mubr.bf16.gmra.mxu0 %v455
      %v616 = vpop.f32.mrf.mxu0
      %v617 = vadd.f32 %v477, %v616
      %v618 = vpop.f32.mrf.mxu0
      %v619 = vpop.f32.mrf.mxu0
      %v620 = vadd.f32 %v477, %v619
      %v621 = vpop.f32.mrf.mxu0
      %622 = vdwg.mxu0
      %v623 = vmax.f32 %v561, 0.0
      %v624 = vmax.f32 %v564, 0.0
      %v625 = vmax.f32 %v569, 0.0
      %v626 = vmax.f32 %v572, 0.0
      %v627 = vmax.f32 %v577, 0.0
      %v628 = vmax.f32 %v580, 0.0
      %v629 = vmax.f32 %v585, 0.0
      %v630 = vmax.f32 %v588, 0.0
      %v631 = vmax.f32 %v593, 0.0
      %v632 = vmax.f32 %v596, 0.0
      %v633 = vmax.f32 %v601, 0.0
      %v634 = vmax.f32 %v604, 0.0
      %v635 = vmax.f32 %v609, 0.0
      %v636 = vmax.f32 %v612, 0.0
      %v637 = vmax.f32 %v617, 0.0
      %v638 = vmax.f32 %v620, 0.0
      %v639 = vpack.c.bf16 %v624, %v623
      %v640 = vpack.c.bf16 %v626, %v625
      %v641 = vpack.c.bf16 %v628, %v627
      %v642 = vpack.c.bf16 %v630, %v629
      %v643 = vpack.c.bf16 %v632, %v631
      %v644 = vpack.c.bf16 %v634, %v633
      %v645 = vpack.c.bf16 %v636, %v635
      %v646 = vpack.c.bf16 %v638, %v637
      %s647 = scalar_lea.vmem %s2, 128
      %v648 = vld [vmem:[%s647] sm:$0xf]
      %v649 = vld [vmem:[%s647 + $0x4] sm:$0xf]
      %v650 = vld [vmem:[%s647 + $0x8] sm:$0xf]
      %v651 = vld [vmem:[%s647 + $0xc] sm:$0xf]
      %v652 = vld [vmem:[%s647 + $0x10] sm:$0xf]
      %v653 = vld [vmem:[%s647 + $0x14] sm:$0xf]
      %v654 = vld [vmem:[%s647 + $0x18] sm:$0xf]
      %v655 = vld [vmem:[%s647 + $0x1c] sm:$0xf]
      %v656 = vld [vmem:[%s647 + $0x20] sm:$0xf]
      %v657 = vld [vmem:[%s647 + $0x24] sm:$0xf]
      %v658 = vld [vmem:[%s647 + $0x28] sm:$0xf]
      %v659 = vld [vmem:[%s647 + $0x2c] sm:$0xf]
      %v660 = vld [vmem:[%s647 + $0x30] sm:$0xf]
      %v661 = vld [vmem:[%s647 + $0x34] sm:$0xf]
      %v662 = vld [vmem:[%s647 + $0x38] sm:$0xf]
      %v663 = vld [vmem:[%s647 + $0x3c] sm:$0xf]
      %v664 = vld [vmem:[%s3 + $0x2] sm:$0x1]
      %v665 = vlaneseq
      %v666 = vshrl.u32 %v665, 7
      %v667 = vsub.s32 0, %v666
      %v668 = vrot.slane %v664, %v667
      %v685 = vunpack.c.l.b16 %v648
      %v686 = vunpack.c.l.b16 %v649
      %v687 = vunpack.c.l.b16 %v650
      %v688 = vunpack.c.l.b16 %v651
      %v689 = vunpack.c.l.b16 %v652
      %v690 = vunpack.c.l.b16 %v653
      %v691 = vunpack.c.l.b16 %v654
      %v692 = vunpack.c.l.b16 %v655
      %v693 = vunpack.c.l.b16 %v656
      %v694 = vunpack.c.l.b16 %v657
      %v695 = vunpack.c.l.b16 %v658
      %v696 = vunpack.c.l.b16 %v659
      %v697 = vunpack.c.l.b16 %v660
      %v698 = vunpack.c.l.b16 %v661
      %v699 = vunpack.c.l.b16 %v662
      %v700 = vunpack.c.l.b16 %v663
      %v701 = vpack.c.b16 %v686, %v685
      %v702 = vpack.c.b16 %v688, %v687
      %v703 = vpack.c.b16 %v690, %v689
      %v704 = vpack.c.b16 %v692, %v691
      %v705 = vpack.c.b16 %v694, %v693
      %v706 = vpack.c.b16 %v696, %v695
      %v707 = vpack.c.b16 %v698, %v697
      %v708 = vpack.c.b16 %v700, %v699
      %717 = vmatprep.subr.bf16.mxu0 0
      %718 = vmatpush1.bf16.msra.mxu0 %v708
      %719 = vmatprep.subr.bf16.mxu0 0
      %720 = vmatpush1.bf16.msra.mxu0 %v707
      %721 = vmatprep.subr.bf16.mxu0 0
      %722 = vmatpush1.bf16.msra.mxu0 %v706
      %723 = vmatprep.subr.bf16.mxu0 0
      %724 = vmatpush1.bf16.msra.mxu0 %v705
      %725 = vmatprep.subr.bf16.mxu0 0
      %726 = vmatpush1.bf16.msra.mxu0 %v704
      %727 = vmatprep.subr.bf16.mxu0 0
      %728 = vmatpush1.bf16.msra.mxu0 %v703
      %729 = vmatprep.subr.bf16.mxu0 0
      %730 = vmatpush1.bf16.msra.mxu0 %v702
      %731 = vmatprep.subr.bf16.mxu0 0
      %732 = vmatpush1.bf16.msra.mxu0 %v701
      %733 = vmatprep.subr.bf16.mxu0 0
      %734 = vmatpush2.bf16.msra.mxu0 0
      %735 = vmatprep.subr.bf16.mxu0 0
      %736 = vmatpush2.bf16.msra.mxu0 0
      %737 = vmatprep.subr.bf16.mxu0 0
      %738 = vmatpush2.bf16.msra.mxu0 0
      %739 = vmatprep.subr.bf16.mxu0 0
      %740 = vmatpush2.bf16.msra.mxu0 0
      %741 = vmatprep.subr.bf16.mxu0 0
      %742 = vmatpush2.bf16.msra.mxu0 0
      %743 = vmatprep.subr.bf16.mxu0 0
      %744 = vmatpush2.bf16.msra.mxu0 0
      %745 = vmatprep.subr.bf16.mxu0 0
      %746 = vmatpush2.bf16.msra.mxu0 0
      %747 = vmatprep.subr.bf16.mxu0 0
      %748 = vmatpush2.bf16.msra.mxu0 0
      %749 = vmatprep.mubr.bf16.mxu0 0
      %750 = vmatmul.mubr.bf16.gmra.mxu0 %v639
      %v751 = vpop.f32.mrf.mxu0
      %v752 = vadd.f32 %v668, %v751
      %v753 = vpop.f32.mrf.mxu0
      %v754 = vpop.f32.mrf.mxu0
      %v755 = vadd.f32 %v668, %v754
      %v756 = vpop.f32.mrf.mxu0
      %757 = vmatprep.mubr.bf16.mxu0 0
      %758 = vmatmul.mubr.bf16.gmra.mxu0 %v640
      %v759 = vpop.f32.mrf.mxu0
      %v760 = vadd.f32 %v668, %v759
      %v761 = vpop.f32.mrf.mxu0
      %v762 = vpop.f32.mrf.mxu0
      %v763 = vadd.f32 %v668, %v762
      %v764 = vpop.f32.mrf.mxu0
      %765 = vmatprep.mubr.bf16.mxu0 0
      %766 = vmatmul.mubr.bf16.gmra.mxu0 %v641
      %v767 = vpop.f32.mrf.mxu0
      %v768 = vadd.f32 %v668, %v767
      %v769 = vpop.f32.mrf.mxu0
      %v770 = vpop.f32.mrf.mxu0
      %v771 = vadd.f32 %v668, %v770
      %v772 = vpop.f32.mrf.mxu0
      %773 = vmatprep.mubr.bf16.mxu0 0
      %774 = vmatmul.mubr.bf16.gmra.mxu0 %v642
      %v775 = vpop.f32.mrf.mxu0
      %v776 = vadd.f32 %v668, %v775
      %v777 = vpop.f32.mrf.mxu0
      %v778 = vpop.f32.mrf.mxu0
      %v779 = vadd.f32 %v668, %v778
      %v780 = vpop.f32.mrf.mxu0
      %781 = vmatprep.mubr.bf16.mxu0 0
      %782 = vmatmul.mubr.bf16.gmra.mxu0 %v643
      %v783 = vpop.f32.mrf.mxu0
      %v784 = vadd.f32 %v668, %v783
      %v785 = vpop.f32.mrf.mxu0
      %v786 = vpop.f32.mrf.mxu0
      %v787 = vadd.f32 %v668, %v786
      %v788 = vpop.f32.mrf.mxu0
      %789 = vmatprep.mubr.bf16.mxu0 0
      %790 = vmatmul.mubr.bf16.gmra.mxu0 %v644
      %v791 = vpop.f32.mrf.mxu0
      %v792 = vadd.f32 %v668, %v791
      %v793 = vpop.f32.mrf.mxu0
      %v794 = vpop.f32.mrf.mxu0
      %v795 = vadd.f32 %v668, %v794
      %v796 = vpop.f32.mrf.mxu0
      %797 = vmatprep.mubr.bf16.mxu0 0
      %798 = vmatmul.mubr.bf16.gmra.mxu0 %v645
      %v799 = vpop.f32.mrf.mxu0
      %v800 = vadd.f32 %v668, %v799
      %v801 = vpop.f32.mrf.mxu0
      %v802 = vpop.f32.mrf.mxu0
      %v803 = vadd.f32 %v668, %v802
      %v804 = vpop.f32.mrf.mxu0
      %805 = vmatprep.mubr.bf16.mxu0 0
      %806 = vmatmul.mubr.bf16.gmra.mxu0 %v646
      %v807 = vpop.f32.mrf.mxu0
      %v808 = vadd.f32 %v668, %v807
      %v809 = vpop.f32.mrf.mxu0
      %v810 = vpop.f32.mrf.mxu0
      %v811 = vadd.f32 %v668, %v810
      %v812 = vpop.f32.mrf.mxu0
      %813 = vdwg.mxu0
      %s814 = scalar_lea.vmem %s2, 192
      %v815 = vld [vmem:[%s814] sm:$0xf]
      %v816 = vld [vmem:[%s814 + $0x4] sm:$0xf]
      %v817 = vld [vmem:[%s814 + $0x8] sm:$0xf]
      %v818 = vld [vmem:[%s814 + $0xc] sm:$0xf]
      %v819 = vld [vmem:[%s814 + $0x10] sm:$0xf]
      %v820 = vld [vmem:[%s814 + $0x14] sm:$0xf]
      %v821 = vld [vmem:[%s814 + $0x18] sm:$0xf]
      %v822 = vld [vmem:[%s814 + $0x1c] sm:$0xf]
      %v823 = vld [vmem:[%s814 + $0x20] sm:$0xf]
      %v824 = vld [vmem:[%s814 + $0x24] sm:$0xf]
      %v825 = vld [vmem:[%s814 + $0x28] sm:$0xf]
      %v826 = vld [vmem:[%s814 + $0x2c] sm:$0xf]
      %v827 = vld [vmem:[%s814 + $0x30] sm:$0xf]
      %v828 = vld [vmem:[%s814 + $0x34] sm:$0xf]
      %v829 = vld [vmem:[%s814 + $0x38] sm:$0xf]
      %v830 = vld [vmem:[%s814 + $0x3c] sm:$0xf]
      %v831 = vld [vmem:[%s3 + $0x3] sm:$0x1]
      %v832 = vlaneseq
      %v833 = vshrl.u32 %v832, 7
      %v834 = vsub.s32 0, %v833
      %v835 = vrot.slane %v831, %v834
      %v852 = vunpack.c.l.b16 %v815
      %v853 = vunpack.c.l.b16 %v816
      %v854 = vunpack.c.l.b16 %v817
      %v855 = vunpack.c.l.b16 %v818
      %v856 = vunpack.c.l.b16 %v819
      %v857 = vunpack.c.l.b16 %v820
      %v858 = vunpack.c.l.b16 %v821
      %v859 = vunpack.c.l.b16 %v822
      %v860 = vunpack.c.l.b16 %v823
      %v861 = vunpack.c.l.b16 %v824
      %v862 = vunpack.c.l.b16 %v825
      %v863 = vunpack.c.l.b16 %v826
      %v864 = vunpack.c.l.b16 %v827
      %v865 = vunpack.c.l.b16 %v828
      %v866 = vunpack.c.l.b16 %v829
      %v867 = vunpack.c.l.b16 %v830
      %v868 = vpack.c.b16 %v853, %v852
      %v869 = vpack.c.b16 %v855, %v854
      %v870 = vpack.c.b16 %v857, %v856
      %v871 = vpack.c.b16 %v859, %v858
      %v872 = vpack.c.b16 %v861, %v860
      %v873 = vpack.c.b16 %v863, %v862
      %v874 = vpack.c.b16 %v865, %v864
      %v875 = vpack.c.b16 %v867, %v866
      %884 = vmatprep.subr.bf16.mxu0 0
      %885 = vmatpush1.bf16.msra.mxu0 %v875
      %886 = vmatprep.subr.bf16.mxu0 0
      %887 = vmatpush1.bf16.msra.mxu0 %v874
      %888 = vmatprep.subr.bf16.mxu0 0
      %889 = vmatpush1.bf16.msra.mxu0 %v873
      %890 = vmatprep.subr.bf16.mxu0 0
      %891 = vmatpush1.bf16.msra.mxu0 %v872
      %892 = vmatprep.subr.bf16.mxu0 0
      %893 = vmatpush1.bf16.msra.mxu0 %v871
      %894 = vmatprep.subr.bf16.mxu0 0
      %895 = vmatpush1.bf16.msra.mxu0 %v870
      %896 = vmatprep.subr.bf16.mxu0 0
      %897 = vmatpush1.bf16.msra.mxu0 %v869
      %898 = vmatprep.subr.bf16.mxu0 0
      %899 = vmatpush1.bf16.msra.mxu0 %v868
      %900 = vmatprep.subr.bf16.mxu0 0
      %901 = vmatpush2.bf16.msra.mxu0 0
      %902 = vmatprep.subr.bf16.mxu0 0
      %903 = vmatpush2.bf16.msra.mxu0 0
      %904 = vmatprep.subr.bf16.mxu0 0
      %905 = vmatpush2.bf16.msra.mxu0 0
      %906 = vmatprep.subr.bf16.mxu0 0
      %907 = vmatpush2.bf16.msra.mxu0 0
      %908 = vmatprep.subr.bf16.mxu0 0
      %909 = vmatpush2.bf16.msra.mxu0 0
      %910 = vmatprep.subr.bf16.mxu0 0
      %911 = vmatpush2.bf16.msra.mxu0 0
      %912 = vmatprep.subr.bf16.mxu0 0
      %913 = vmatpush2.bf16.msra.mxu0 0
      %914 = vmatprep.subr.bf16.mxu0 0
      %915 = vmatpush2.bf16.msra.mxu0 0
      %916 = vmatprep.mubr.bf16.mxu0 0
      %917 = vmatmul.mubr.bf16.gmra.mxu0 %v639
      %v918 = vpop.f32.mrf.mxu0
      %v919 = vadd.f32 %v835, %v918
      %v920 = vpop.f32.mrf.mxu0
      %v921 = vpop.f32.mrf.mxu0
      %v922 = vadd.f32 %v835, %v921
      %v923 = vpop.f32.mrf.mxu0
      %924 = vmatprep.mubr.bf16.mxu0 0
      %925 = vmatmul.mubr.bf16.gmra.mxu0 %v640
      %v926 = vpop.f32.mrf.mxu0
      %v927 = vadd.f32 %v835, %v926
      %v928 = vpop.f32.mrf.mxu0
      %v929 = vpop.f32.mrf.mxu0
      %v930 = vadd.f32 %v835, %v929
      %v931 = vpop.f32.mrf.mxu0
      %932 = vmatprep.mubr.bf16.mxu0 0
      %933 = vmatmul.mubr.bf16.gmra.mxu0 %v641
      %v934 = vpop.f32.mrf.mxu0
      %v935 = vadd.f32 %v835, %v934
      %v936 = vpop.f32.mrf.mxu0
      %v937 = vpop.f32.mrf.mxu0
      %v938 = vadd.f32 %v835, %v937
      %v939 = vpop.f32.mrf.mxu0
      %940 = vmatprep.mubr.bf16.mxu0 0
      %941 = vmatmul.mubr.bf16.gmra.mxu0 %v642
      %v942 = vpop.f32.mrf.mxu0
      %v943 = vadd.f32 %v835, %v942
      %v944 = vpop.f32.mrf.mxu0
      %v945 = vpop.f32.mrf.mxu0
      %v946 = vadd.f32 %v835, %v945
      %v947 = vpop.f32.mrf.mxu0
      %948 = vmatprep.mubr.bf16.mxu0 0
      %949 = vmatmul.mubr.bf16.gmra.mxu0 %v643
      %v950 = vpop.f32.mrf.mxu0
      %v951 = vadd.f32 %v835, %v950
      %v952 = vpop.f32.mrf.mxu0
      %v953 = vpop.f32.mrf.mxu0
      %v954 = vadd.f32 %v835, %v953
      %v955 = vpop.f32.mrf.mxu0
      %956 = vmatprep.mubr.bf16.mxu0 0
      %957 = vmatmul.mubr.bf16.gmra.mxu0 %v644
      %v958 = vpop.f32.mrf.mxu0
      %v959 = vadd.f32 %v835, %v958
      %v960 = vpop.f32.mrf.mxu0
      %v961 = vpop.f32.mrf.mxu0
      %v962 = vadd.f32 %v835, %v961
      %v963 = vpop.f32.mrf.mxu0
      %964 = vmatprep.mubr.bf16.mxu0 0
      %965 = vmatmul.mubr.bf16.gmra.mxu0 %v645
      %v966 = vpop.f32.mrf.mxu0
      %v967 = vadd.f32 %v835, %v966
      %v968 = vpop.f32.mrf.mxu0
      %v969 = vpop.f32.mrf.mxu0
      %v970 = vadd.f32 %v835, %v969
      %v971 = vpop.f32.mrf.mxu0
      %972 = vmatprep.mubr.bf16.mxu0 0
      %973 = vmatmul.mubr.bf16.gmra.mxu0 %v646
      %v974 = vpop.f32.mrf.mxu0
      %v975 = vadd.f32 %v835, %v974
      %v976 = vpop.f32.mrf.mxu0
      %v977 = vpop.f32.mrf.mxu0
      %v978 = vadd.f32 %v835, %v977
      %v979 = vpop.f32.mrf.mxu0
      %980 = vdwg.mxu0
      %v981 = vmul.f32 %v919, 0.5
      %v982 = vmul.f32 %v922, 0.5
      %v983 = vmul.f32 %v927, 0.5
      %v984 = vmul.f32 %v930, 0.5
      %v985 = vmul.f32 %v935, 0.5
      %v986 = vmul.f32 %v938, 0.5
      %v987 = vmul.f32 %v943, 0.5
      %v988 = vmul.f32 %v946, 0.5
      %v989 = vmul.f32 %v951, 0.5
      %v990 = vmul.f32 %v954, 0.5
      %v991 = vmul.f32 %v959, 0.5
      %v992 = vmul.f32 %v962, 0.5
      %v993 = vmul.f32 %v967, 0.5
      %v994 = vmul.f32 %v970, 0.5
      %v995 = vmul.f32 %v975, 0.5
      %v996 = vmul.f32 %v978, 0.5
      %v997 = vmul.f32 %v981, 1.442695
      %v998 = vpow.pop %v997
      %v999 = vmul.f32 %v982, 1.442695
      %v1000 = vpow.pop %v999
      %v1001 = vmul.f32 %v983, 1.442695
      %v1002 = vpow.pop %v1001
      %v1003 = vmul.f32 %v984, 1.442695
      %v1004 = vpow.pop %v1003
      %v1005 = vmul.f32 %v985, 1.442695
      %v1006 = vpow.pop %v1005
      %v1007 = vmul.f32 %v986, 1.442695
      %v1008 = vpow.pop %v1007
      %v1009 = vmul.f32 %v987, 1.442695
      %v1010 = vpow.pop %v1009
      %v1011 = vmul.f32 %v988, 1.442695
      %v1012 = vpow.pop %v1011
      %v1013 = vmul.f32 %v989, 1.442695
      %v1014 = vpow.pop %v1013
      %v1015 = vmul.f32 %v990, 1.442695
      %v1016 = vpow.pop %v1015
      %v1017 = vmul.f32 %v991, 1.442695
      %v1018 = vpow.pop %v1017
      %v1019 = vmul.f32 %v992, 1.442695
      %v1020 = vpow.pop %v1019
      %v1021 = vmul.f32 %v993, 1.442695
      %v1022 = vpow.pop %v1021
      %v1023 = vmul.f32 %v994, 1.442695
      %v1024 = vpow.pop %v1023
      %v1025 = vmul.f32 %v995, 1.442695
      %v1026 = vpow.pop %v1025
      %v1027 = vmul.f32 %v996, 1.442695
      %v1028 = vpow.pop %v1027
      %v1029 = vmul.f32 %v242, %v998
      %v1030 = vmul.f32 %v243, %v1000
      %v1031 = vmul.f32 %v244, %v1002
      %v1032 = vmul.f32 %v245, %v1004
      %v1033 = vmul.f32 %v246, %v1006
      %v1034 = vmul.f32 %v247, %v1008
      %v1035 = vmul.f32 %v248, %v1010
      %v1036 = vmul.f32 %v249, %v1012
      %v1037 = vmul.f32 %v250, %v1014
      %v1038 = vmul.f32 %v251, %v1016
      %v1039 = vmul.f32 %v252, %v1018
      %v1040 = vmul.f32 %v253, %v1020
      %v1041 = vmul.f32 %v254, %v1022
      %v1042 = vmul.f32 %v255, %v1024
      %v1043 = vmul.f32 %v256, %v1026
      %v1044 = vmul.f32 %v257, %v1028
      %v1045 = vadd.f32 %v752, %v1029
      %v1046 = vadd.f32 %v755, %v1030
      %v1047 = vadd.f32 %v760, %v1031
      %v1048 = vadd.f32 %v763, %v1032
      %v1049 = vadd.f32 %v768, %v1033
      %v1050 = vadd.f32 %v771, %v1034
      %v1051 = vadd.f32 %v776, %v1035
      %v1052 = vadd.f32 %v779, %v1036
      %v1053 = vadd.f32 %v784, %v1037
      %v1054 = vadd.f32 %v787, %v1038
      %v1055 = vadd.f32 %v792, %v1039
      %v1056 = vadd.f32 %v795, %v1040
      %v1057 = vadd.f32 %v800, %v1041
      %v1058 = vadd.f32 %v803, %v1042
      %v1059 = vadd.f32 %v808, %v1043
      %v1060 = vadd.f32 %v811, %v1044
      %v1061 = vpack.c.bf16 %v1046, %v1045
      %v1062 = vpack.c.bf16 %v1048, %v1047
      %v1063 = vpack.c.bf16 %v1050, %v1049
      %v1064 = vpack.c.bf16 %v1052, %v1051
      %v1065 = vpack.c.bf16 %v1054, %v1053
      %v1066 = vpack.c.bf16 %v1056, %v1055
      %v1067 = vpack.c.bf16 %v1058, %v1057
      %v1068 = vpack.c.bf16 %v1060, %v1059
      %s1069 = scalar_lea.vmem %s2, 256
      %v1070 = vld [vmem:[%s1069] sm:$0xf]
      %v1071 = vld [vmem:[%s1069 + $0x4] sm:$0xf]
      %v1072 = vld [vmem:[%s1069 + $0x8] sm:$0xf]
      %v1073 = vld [vmem:[%s1069 + $0xc] sm:$0xf]
      %v1074 = vld [vmem:[%s1069 + $0x10] sm:$0xf]
      %v1075 = vld [vmem:[%s1069 + $0x14] sm:$0xf]
      %v1076 = vld [vmem:[%s1069 + $0x18] sm:$0xf]
      %v1077 = vld [vmem:[%s1069 + $0x1c] sm:$0xf]
      %v1078 = vld [vmem:[%s1069 + $0x20] sm:$0xf]
      %v1079 = vld [vmem:[%s1069 + $0x24] sm:$0xf]
      %v1080 = vld [vmem:[%s1069 + $0x28] sm:$0xf]
      %v1081 = vld [vmem:[%s1069 + $0x2c] sm:$0xf]
      %v1082 = vld [vmem:[%s1069 + $0x30] sm:$0xf]
      %v1083 = vld [vmem:[%s1069 + $0x34] sm:$0xf]
      %v1084 = vld [vmem:[%s1069 + $0x38] sm:$0xf]
      %v1085 = vld [vmem:[%s1069 + $0x3c] sm:$0xf]
      %v1086 = vld [vmem:[%s3 + $0x4] sm:$0x1]
      %v1087 = vlaneseq
      %v1088 = vshrl.u32 %v1087, 7
      %v1089 = vsub.s32 0, %v1088
      %v1090 = vrot.slane %v1086, %v1089
      %v1107 = vunpack.c.l.b16 %v1070
      %v1108 = vunpack.c.l.b16 %v1071
      %v1109 = vunpack.c.l.b16 %v1072
      %v1110 = vunpack.c.l.b16 %v1073
      %v1111 = vunpack.c.l.b16 %v1074
      %v1112 = vunpack.c.l.b16 %v1075
      %v1113 = vunpack.c.l.b16 %v1076
      %v1114 = vunpack.c.l.b16 %v1077
      %v1115 = vunpack.c.l.b16 %v1078
      %v1116 = vunpack.c.l.b16 %v1079
      %v1117 = vunpack.c.l.b16 %v1080
      %v1118 = vunpack.c.l.b16 %v1081
      %v1119 = vunpack.c.l.b16 %v1082
      %v1120 = vunpack.c.l.b16 %v1083
      %v1121 = vunpack.c.l.b16 %v1084
      %v1122 = vunpack.c.l.b16 %v1085
      %v1123 = vpack.c.b16 %v1108, %v1107
      %v1124 = vpack.c.b16 %v1110, %v1109
      %v1125 = vpack.c.b16 %v1112, %v1111
      %v1126 = vpack.c.b16 %v1114, %v1113
      %v1127 = vpack.c.b16 %v1116, %v1115
      %v1128 = vpack.c.b16 %v1118, %v1117
      %v1129 = vpack.c.b16 %v1120, %v1119
      %v1130 = vpack.c.b16 %v1122, %v1121
      %1139 = vmatprep.subr.bf16.mxu0 0
      %1140 = vmatpush1.bf16.msra.mxu0 %v1130
      %1141 = vmatprep.subr.bf16.mxu0 0
      %1142 = vmatpush1.bf16.msra.mxu0 %v1129
      %1143 = vmatprep.subr.bf16.mxu0 0
      %1144 = vmatpush1.bf16.msra.mxu0 %v1128
      %1145 = vmatprep.subr.bf16.mxu0 0
      %1146 = vmatpush1.bf16.msra.mxu0 %v1127
      %1147 = vmatprep.subr.bf16.mxu0 0
      %1148 = vmatpush1.bf16.msra.mxu0 %v1126
      %1149 = vmatprep.subr.bf16.mxu0 0
      %1150 = vmatpush1.bf16.msra.mxu0 %v1125
      %1151 = vmatprep.subr.bf16.mxu0 0
      %1152 = vmatpush1.bf16.msra.mxu0 %v1124
      %1153 = vmatprep.subr.bf16.mxu0 0
      %1154 = vmatpush1.bf16.msra.mxu0 %v1123
      %1155 = vmatprep.subr.bf16.mxu0 0
      %1156 = vmatpush2.bf16.msra.mxu0 0
      %1157 = vmatprep.subr.bf16.mxu0 0
      %1158 = vmatpush2.bf16.msra.mxu0 0
      %1159 = vmatprep.subr.bf16.mxu0 0
      %1160 = vmatpush2.bf16.msra.mxu0 0
      %1161 = vmatprep.subr.bf16.mxu0 0
      %1162 = vmatpush2.bf16.msra.mxu0 0
      %1163 = vmatprep.subr.bf16.mxu0 0
      %1164 = vmatpush2.bf16.msra.mxu0 0
      %1165 = vmatprep.subr.bf16.mxu0 0
      %1166 = vmatpush2.bf16.msra.mxu0 0
      %1167 = vmatprep.subr.bf16.mxu0 0
      %1168 = vmatpush2.bf16.msra.mxu0 0
      %1169 = vmatprep.subr.bf16.mxu0 0
      %1170 = vmatpush2.bf16.msra.mxu0 0
      %1171 = vmatprep.mubr.bf16.mxu0 0
      %1172 = vmatmul.mubr.bf16.gmra.mxu0 %v1061
      %v1173 = vpop.f32.mrf.mxu0
      %v1174 = vadd.f32 %v1090, %v1173
      %v1175 = vpop.f32.mrf.mxu0
      %v1176 = vpop.f32.mrf.mxu0
      %v1177 = vadd.f32 %v1090, %v1176
      %v1178 = vpop.f32.mrf.mxu0
      %1179 = vmatprep.mubr.bf16.mxu0 0
      %1180 = vmatmul.mubr.bf16.gmra.mxu0 %v1062
      %v1181 = vpop.f32.mrf.mxu0
      %v1182 = vadd.f32 %v1090, %v1181
      %v1183 = vpop.f32.mrf.mxu0
      %v1184 = vpop.f32.mrf.mxu0
      %v1185 = vadd.f32 %v1090, %v1184
      %v1186 = vpop.f32.mrf.mxu0
      %1187 = vmatprep.mubr.bf16.mxu0 0
      %1188 = vmatmul.mubr.bf16.gmra.mxu0 %v1063
      %v1189 = vpop.f32.mrf.mxu0
      %v1190 = vadd.f32 %v1090, %v1189
      %v1191 = vpop.f32.mrf.mxu0
      %v1192 = vpop.f32.mrf.mxu0
      %v1193 = vadd.f32 %v1090, %v1192
      %v1194 = vpop.f32.mrf.mxu0
      %1195 = vmatprep.mubr.bf16.mxu0 0
      %1196 = vmatmul.mubr.bf16.gmra.mxu0 %v1064
      %v1197 = vpop.f32.mrf.mxu0
      %v1198 = vadd.f32 %v1090, %v1197
      %v1199 = vpop.f32.mrf.mxu0
      %v1200 = vpop.f32.mrf.mxu0
      %v1201 = vadd.f32 %v1090, %v1200
      %v1202 = vpop.f32.mrf.mxu0
      %1203 = vmatprep.mubr.bf16.mxu0 0
      %1204 = vmatmul.mubr.bf16.gmra.mxu0 %v1065
      %v1205 = vpop.f32.mrf.mxu0
      %v1206 = vadd.f32 %v1090, %v1205
      %v1207 = vpop.f32.mrf.mxu0
      %v1208 = vpop.f32.mrf.mxu0
      %v1209 = vadd.f32 %v1090, %v1208
      %v1210 = vpop.f32.mrf.mxu0
      %1211 = vmatprep.mubr.bf16.mxu0 0
      %1212 = vmatmul.mubr.bf16.gmra.mxu0 %v1066
      %v1213 = vpop.f32.mrf.mxu0
      %v1214 = vadd.f32 %v1090, %v1213
      %v1215 = vpop.f32.mrf.mxu0
      %v1216 = vpop.f32.mrf.mxu0
      %v1217 = vadd.f32 %v1090, %v1216
      %v1218 = vpop.f32.mrf.mxu0
      %1219 = vmatprep.mubr.bf16.mxu0 0
      %1220 = vmatmul.mubr.bf16.gmra.mxu0 %v1067
      %v1221 = vpop.f32.mrf.mxu0
      %v1222 = vadd.f32 %v1090, %v1221
      %v1223 = vpop.f32.mrf.mxu0
      %v1224 = vpop.f32.mrf.mxu0
      %v1225 = vadd.f32 %v1090, %v1224
      %v1226 = vpop.f32.mrf.mxu0
      %1227 = vmatprep.mubr.bf16.mxu0 0
      %1228 = vmatmul.mubr.bf16.gmra.mxu0 %v1068
      %v1229 = vpop.f32.mrf.mxu0
      %v1230 = vadd.f32 %v1090, %v1229
      %v1231 = vpop.f32.mrf.mxu0
      %v1232 = vpop.f32.mrf.mxu0
      %v1233 = vadd.f32 %v1090, %v1232
      %v1234 = vpop.f32.mrf.mxu0
      %1235 = vdwg.mxu0
      %v1236 = vmax.f32 %v1174, 0.0
      %v1237 = vmax.f32 %v1177, 0.0
      %v1238 = vmax.f32 %v1182, 0.0
      %v1239 = vmax.f32 %v1185, 0.0
      %v1240 = vmax.f32 %v1190, 0.0
      %v1241 = vmax.f32 %v1193, 0.0
      %v1242 = vmax.f32 %v1198, 0.0
      %v1243 = vmax.f32 %v1201, 0.0
      %v1244 = vmax.f32 %v1206, 0.0
      %v1245 = vmax.f32 %v1209, 0.0
      %v1246 = vmax.f32 %v1214, 0.0
      %v1247 = vmax.f32 %v1217, 0.0
      %v1248 = vmax.f32 %v1222, 0.0
      %v1249 = vmax.f32 %v1225, 0.0
      %v1250 = vmax.f32 %v1230, 0.0
      %v1251 = vmax.f32 %v1233, 0.0
      %v1252 = vpack.c.bf16 %v1237, %v1236
      %v1253 = vpack.c.bf16 %v1239, %v1238
      %v1254 = vpack.c.bf16 %v1241, %v1240
      %v1255 = vpack.c.bf16 %v1243, %v1242
      %v1256 = vpack.c.bf16 %v1245, %v1244
      %v1257 = vpack.c.bf16 %v1247, %v1246
      %v1258 = vpack.c.bf16 %v1249, %v1248
      %v1259 = vpack.c.bf16 %v1251, %v1250
      %s1260 = scalar_lea.vmem %s2, 320
      %v1261 = vld [vmem:[%s1260] sm:$0xf]
      %v1262 = vld [vmem:[%s1260 + $0x4] sm:$0xf]
      %v1263 = vld [vmem:[%s1260 + $0x8] sm:$0xf]
      %v1264 = vld [vmem:[%s1260 + $0xc] sm:$0xf]
      %v1265 = vld [vmem:[%s1260 + $0x10] sm:$0xf]
      %v1266 = vld [vmem:[%s1260 + $0x14] sm:$0xf]
      %v1267 = vld [vmem:[%s1260 + $0x18] sm:$0xf]
      %v1268 = vld [vmem:[%s1260 + $0x1c] sm:$0xf]
      %v1269 = vld [vmem:[%s1260 + $0x20] sm:$0xf]
      %v1270 = vld [vmem:[%s1260 + $0x24] sm:$0xf]
      %v1271 = vld [vmem:[%s1260 + $0x28] sm:$0xf]
      %v1272 = vld [vmem:[%s1260 + $0x2c] sm:$0xf]
      %v1273 = vld [vmem:[%s1260 + $0x30] sm:$0xf]
      %v1274 = vld [vmem:[%s1260 + $0x34] sm:$0xf]
      %v1275 = vld [vmem:[%s1260 + $0x38] sm:$0xf]
      %v1276 = vld [vmem:[%s1260 + $0x3c] sm:$0xf]
      %v1277 = vld [vmem:[%s3 + $0x5] sm:$0x1]
      %v1278 = vlaneseq
      %v1279 = vshrl.u32 %v1278, 7
      %v1280 = vsub.s32 0, %v1279
      %v1281 = vrot.slane %v1277, %v1280
      %v1298 = vunpack.c.l.b16 %v1261
      %v1299 = vunpack.c.l.b16 %v1262
      %v1300 = vunpack.c.l.b16 %v1263
      %v1301 = vunpack.c.l.b16 %v1264
      %v1302 = vunpack.c.l.b16 %v1265
      %v1303 = vunpack.c.l.b16 %v1266
      %v1304 = vunpack.c.l.b16 %v1267
      %v1305 = vunpack.c.l.b16 %v1268
      %v1306 = vunpack.c.l.b16 %v1269
      %v1307 = vunpack.c.l.b16 %v1270
      %v1308 = vunpack.c.l.b16 %v1271
      %v1309 = vunpack.c.l.b16 %v1272
      %v1310 = vunpack.c.l.b16 %v1273
      %v1311 = vunpack.c.l.b16 %v1274
      %v1312 = vunpack.c.l.b16 %v1275
      %v1313 = vunpack.c.l.b16 %v1276
      %v1314 = vpack.c.b16 %v1299, %v1298
      %v1315 = vpack.c.b16 %v1301, %v1300
      %v1316 = vpack.c.b16 %v1303, %v1302
      %v1317 = vpack.c.b16 %v1305, %v1304
      %v1318 = vpack.c.b16 %v1307, %v1306
      %v1319 = vpack.c.b16 %v1309, %v1308
      %v1320 = vpack.c.b16 %v1311, %v1310
      %v1321 = vpack.c.b16 %v1313, %v1312
      %1330 = vmatprep.subr.bf16.mxu0 0
      %1331 = vmatpush1.bf16.msra.mxu0 %v1321
      %1332 = vmatprep.subr.bf16.mxu0 0
      %1333 = vmatpush1.bf16.msra.mxu0 %v1320
      %1334 = vmatprep.subr.bf16.mxu0 0
      %1335 = vmatpush1.bf16.msra.mxu0 %v1319
      %1336 = vmatprep.subr.bf16.mxu0 0
      %1337 = vmatpush1.bf16.msra.mxu0 %v1318
      %1338 = vmatprep.subr.bf16.mxu0 0
      %1339 = vmatpush1.bf16.msra.mxu0 %v1317
      %1340 = vmatprep.subr.bf16.mxu0 0
      %1341 = vmatpush1.bf16.msra.mxu0 %v1316
      %1342 = vmatprep.subr.bf16.mxu0 0
      %1343 = vmatpush1.bf16.msra.mxu0 %v1315
      %1344 = vmatprep.subr.bf16.mxu0 0
      %1345 = vmatpush1.bf16.msra.mxu0 %v1314
      %1346 = vmatprep.subr.bf16.mxu0 0
      %1347 = vmatpush2.bf16.msra.mxu0 0
      %1348 = vmatprep.subr.bf16.mxu0 0
      %1349 = vmatpush2.bf16.msra.mxu0 0
      %1350 = vmatprep.subr.bf16.mxu0 0
      %1351 = vmatpush2.bf16.msra.mxu0 0
      %1352 = vmatprep.subr.bf16.mxu0 0
      %1353 = vmatpush2.bf16.msra.mxu0 0
      %1354 = vmatprep.subr.bf16.mxu0 0
      %1355 = vmatpush2.bf16.msra.mxu0 0
      %1356 = vmatprep.subr.bf16.mxu0 0
      %1357 = vmatpush2.bf16.msra.mxu0 0
      %1358 = vmatprep.subr.bf16.mxu0 0
      %1359 = vmatpush2.bf16.msra.mxu0 0
      %1360 = vmatprep.subr.bf16.mxu0 0
      %1361 = vmatpush2.bf16.msra.mxu0 0
      %1362 = vmatprep.mubr.bf16.mxu0 0
      %1363 = vmatmul.mubr.bf16.gmra.mxu0 %v1252
      %v1364 = vpop.f32.mrf.mxu0
      %v1365 = vadd.f32 %v1281, %v1364
      %v1366 = vpop.f32.mrf.mxu0
      %v1367 = vpop.f32.mrf.mxu0
      %v1368 = vadd.f32 %v1281, %v1367
      %v1369 = vpop.f32.mrf.mxu0
      %1370 = vmatprep.mubr.bf16.mxu0 0
      %1371 = vmatmul.mubr.bf16.gmra.mxu0 %v1253
      %v1372 = vpop.f32.mrf.mxu0
      %v1373 = vadd.f32 %v1281, %v1372
      %v1374 = vpop.f32.mrf.mxu0
      %v1375 = vpop.f32.mrf.mxu0
      %v1376 = vadd.f32 %v1281, %v1375
      %v1377 = vpop.f32.mrf.mxu0
      %1378 = vmatprep.mubr.bf16.mxu0 0
      %1379 = vmatmul.mubr.bf16.gmra.mxu0 %v1254
      %v1380 = vpop.f32.mrf.mxu0
      %v1381 = vadd.f32 %v1281, %v1380
      %v1382 = vpop.f32.mrf.mxu0
      %v1383 = vpop.f32.mrf.mxu0
      %v1384 = vadd.f32 %v1281, %v1383
      %v1385 = vpop.f32.mrf.mxu0
      %1386 = vmatprep.mubr.bf16.mxu0 0
      %1387 = vmatmul.mubr.bf16.gmra.mxu0 %v1255
      %v1388 = vpop.f32.mrf.mxu0
      %v1389 = vadd.f32 %v1281, %v1388
      %v1390 = vpop.f32.mrf.mxu0
      %v1391 = vpop.f32.mrf.mxu0
      %v1392 = vadd.f32 %v1281, %v1391
      %v1393 = vpop.f32.mrf.mxu0
      %1394 = vmatprep.mubr.bf16.mxu0 0
      %1395 = vmatmul.mubr.bf16.gmra.mxu0 %v1256
      %v1396 = vpop.f32.mrf.mxu0
      %v1397 = vadd.f32 %v1281, %v1396
      %v1398 = vpop.f32.mrf.mxu0
      %v1399 = vpop.f32.mrf.mxu0
      %v1400 = vadd.f32 %v1281, %v1399
      %v1401 = vpop.f32.mrf.mxu0
      %1402 = vmatprep.mubr.bf16.mxu0 0
      %1403 = vmatmul.mubr.bf16.gmra.mxu0 %v1257
      %v1404 = vpop.f32.mrf.mxu0
      %v1405 = vadd.f32 %v1281, %v1404
      %v1406 = vpop.f32.mrf.mxu0
      %v1407 = vpop.f32.mrf.mxu0
      %v1408 = vadd.f32 %v1281, %v1407
      %v1409 = vpop.f32.mrf.mxu0
      %1410 = vmatprep.mubr.bf16.mxu0 0
      %1411 = vmatmul.mubr.bf16.gmra.mxu0 %v1258
      %v1412 = vpop.f32.mrf.mxu0
      %v1413 = vadd.f32 %v1281, %v1412
      %v1414 = vpop.f32.mrf.mxu0
      %v1415 = vpop.f32.mrf.mxu0
      %v1416 = vadd.f32 %v1281, %v1415
      %v1417 = vpop.f32.mrf.mxu0
      %1418 = vmatprep.mubr.bf16.mxu0 0
      %1419 = vmatmul.mubr.bf16.gmra.mxu0 %v1259
      %v1420 = vpop.f32.mrf.mxu0
      %v1421 = vadd.f32 %v1281, %v1420
      %v1422 = vpop.f32.mrf.mxu0
      %v1423 = vpop.f32.mrf.mxu0
      %v1424 = vadd.f32 %v1281, %v1423
      %v1425 = vpop.f32.mrf.mxu0
      %1426 = vdwg.mxu0
      %v1427 = vmax.f32 %v1365, 0.0
      %v1428 = vmax.f32 %v1368, 0.0
      %v1429 = vmax.f32 %v1373, 0.0
      %v1430 = vmax.f32 %v1376, 0.0
      %v1431 = vmax.f32 %v1381, 0.0
      %v1432 = vmax.f32 %v1384, 0.0
      %v1433 = vmax.f32 %v1389, 0.0
      %v1434 = vmax.f32 %v1392, 0.0
      %v1435 = vmax.f32 %v1397, 0.0
      %v1436 = vmax.f32 %v1400, 0.0
      %v1437 = vmax.f32 %v1405, 0.0
      %v1438 = vmax.f32 %v1408, 0.0
      %v1439 = vmax.f32 %v1413, 0.0
      %v1440 = vmax.f32 %v1416, 0.0
      %v1441 = vmax.f32 %v1421, 0.0
      %v1442 = vmax.f32 %v1424, 0.0
      %v1443 = vpack.c.bf16 %v1428, %v1427
      %v1444 = vpack.c.bf16 %v1430, %v1429
      %v1445 = vpack.c.bf16 %v1432, %v1431
      %v1446 = vpack.c.bf16 %v1434, %v1433
      %v1447 = vpack.c.bf16 %v1436, %v1435
      %v1448 = vpack.c.bf16 %v1438, %v1437
      %v1449 = vpack.c.bf16 %v1440, %v1439
      %v1450 = vpack.c.bf16 %v1442, %v1441
      %s1451 = scalar_lea.vmem %s2, 384
      %v1452 = vld [vmem:[%s1451] sm:$0xf]
      %v1453 = vld [vmem:[%s1451 + $0x4] sm:$0xf]
      %v1454 = vld [vmem:[%s1451 + $0x8] sm:$0xf]
      %v1455 = vld [vmem:[%s1451 + $0xc] sm:$0xf]
      %v1456 = vld [vmem:[%s1451 + $0x10] sm:$0xf]
      %v1457 = vld [vmem:[%s1451 + $0x14] sm:$0xf]
      %v1458 = vld [vmem:[%s1451 + $0x18] sm:$0xf]
      %v1459 = vld [vmem:[%s1451 + $0x1c] sm:$0xf]
      %v1460 = vld [vmem:[%s1451 + $0x20] sm:$0xf]
      %v1461 = vld [vmem:[%s1451 + $0x24] sm:$0xf]
      %v1462 = vld [vmem:[%s1451 + $0x28] sm:$0xf]
      %v1463 = vld [vmem:[%s1451 + $0x2c] sm:$0xf]
      %v1464 = vld [vmem:[%s1451 + $0x30] sm:$0xf]
      %v1465 = vld [vmem:[%s1451 + $0x34] sm:$0xf]
      %v1466 = vld [vmem:[%s1451 + $0x38] sm:$0xf]
      %v1467 = vld [vmem:[%s1451 + $0x3c] sm:$0xf]
      %v1468 = vld [vmem:[%s3 + $0x6] sm:$0x1]
      %v1469 = vlaneseq
      %v1470 = vshrl.u32 %v1469, 7
      %v1471 = vsub.s32 0, %v1470
      %v1472 = vrot.slane %v1468, %v1471
      %v1489 = vunpack.c.l.b16 %v1452
      %v1490 = vunpack.c.l.b16 %v1453
      %v1491 = vunpack.c.l.b16 %v1454
      %v1492 = vunpack.c.l.b16 %v1455
      %v1493 = vunpack.c.l.b16 %v1456
      %v1494 = vunpack.c.l.b16 %v1457
      %v1495 = vunpack.c.l.b16 %v1458
      %v1496 = vunpack.c.l.b16 %v1459
      %v1497 = vunpack.c.l.b16 %v1460
      %v1498 = vunpack.c.l.b16 %v1461
      %v1499 = vunpack.c.l.b16 %v1462
      %v1500 = vunpack.c.l.b16 %v1463
      %v1501 = vunpack.c.l.b16 %v1464
      %v1502 = vunpack.c.l.b16 %v1465
      %v1503 = vunpack.c.l.b16 %v1466
      %v1504 = vunpack.c.l.b16 %v1467
      %v1505 = vpack.c.b16 %v1490, %v1489
      %v1506 = vpack.c.b16 %v1492, %v1491
      %v1507 = vpack.c.b16 %v1494, %v1493
      %v1508 = vpack.c.b16 %v1496, %v1495
      %v1509 = vpack.c.b16 %v1498, %v1497
      %v1510 = vpack.c.b16 %v1500, %v1499
      %v1511 = vpack.c.b16 %v1502, %v1501
      %v1512 = vpack.c.b16 %v1504, %v1503
      %1521 = vmatprep.subr.bf16.mxu0 0
      %1522 = vmatpush1.bf16.msra.mxu0 %v1512
      %1523 = vmatprep.subr.bf16.mxu0 0
      %1524 = vmatpush1.bf16.msra.mxu0 %v1511
      %1525 = vmatprep.subr.bf16.mxu0 0
      %1526 = vmatpush1.bf16.msra.mxu0 %v1510
      %1527 = vmatprep.subr.bf16.mxu0 0
      %1528 = vmatpush1.bf16.msra.mxu0 %v1509
      %1529 = vmatprep.subr.bf16.mxu0 0
      %1530 = vmatpush1.bf16.msra.mxu0 %v1508
      %1531 = vmatprep.subr.bf16.mxu0 0
      %1532 = vmatpush1.bf16.msra.mxu0 %v1507
      %1533 = vmatprep.subr.bf16.mxu0 0
      %1534 = vmatpush1.bf16.msra.mxu0 %v1506
      %1535 = vmatprep.subr.bf16.mxu0 0
      %1536 = vmatpush1.bf16.msra.mxu0 %v1505
      %1537 = vmatprep.subr.bf16.mxu0 0
      %1538 = vmatpush2.bf16.msra.mxu0 0
      %1539 = vmatprep.subr.bf16.mxu0 0
      %1540 = vmatpush2.bf16.msra.mxu0 0
      %1541 = vmatprep.subr.bf16.mxu0 0
      %1542 = vmatpush2.bf16.msra.mxu0 0
      %1543 = vmatprep.subr.bf16.mxu0 0
      %1544 = vmatpush2.bf16.msra.mxu0 0
      %1545 = vmatprep.subr.bf16.mxu0 0
      %1546 = vmatpush2.bf16.msra.mxu0 0
      %1547 = vmatprep.subr.bf16.mxu0 0
      %1548 = vmatpush2.bf16.msra.mxu0 0
      %1549 = vmatprep.subr.bf16.mxu0 0
      %1550 = vmatpush2.bf16.msra.mxu0 0
      %1551 = vmatprep.subr.bf16.mxu0 0
      %1552 = vmatpush2.bf16.msra.mxu0 0
      %1553 = vmatprep.mubr.bf16.mxu0 0
      %1554 = vmatmul.mubr.bf16.gmra.mxu0 %v1443
      %v1555 = vpop.f32.mrf.mxu0
      %v1556 = vadd.f32 %v1472, %v1555
      %v1557 = vpop.f32.mrf.mxu0
      %v1558 = vpop.f32.mrf.mxu0
      %v1559 = vadd.f32 %v1472, %v1558
      %v1560 = vpop.f32.mrf.mxu0
      %1561 = vmatprep.mubr.bf16.mxu0 0
      %1562 = vmatmul.mubr.bf16.gmra.mxu0 %v1444
      %v1563 = vpop.f32.mrf.mxu0
      %v1564 = vadd.f32 %v1472, %v1563
      %v1565 = vpop.f32.mrf.mxu0
      %v1566 = vpop.f32.mrf.mxu0
      %v1567 = vadd.f32 %v1472, %v1566
      %v1568 = vpop.f32.mrf.mxu0
      %1569 = vmatprep.mubr.bf16.mxu0 0
      %1570 = vmatmul.mubr.bf16.gmra.mxu0 %v1445
      %v1571 = vpop.f32.mrf.mxu0
      %v1572 = vadd.f32 %v1472, %v1571
      %v1573 = vpop.f32.mrf.mxu0
      %v1574 = vpop.f32.mrf.mxu0
      %v1575 = vadd.f32 %v1472, %v1574
      %v1576 = vpop.f32.mrf.mxu0
      %1577 = vmatprep.mubr.bf16.mxu0 0
      %1578 = vmatmul.mubr.bf16.gmra.mxu0 %v1446
      %v1579 = vpop.f32.mrf.mxu0
      %v1580 = vadd.f32 %v1472, %v1579
      %v1581 = vpop.f32.mrf.mxu0
      %v1582 = vpop.f32.mrf.mxu0
      %v1583 = vadd.f32 %v1472, %v1582
      %v1584 = vpop.f32.mrf.mxu0
      %1585 = vmatprep.mubr.bf16.mxu0 0
      %1586 = vmatmul.mubr.bf16.gmra.mxu0 %v1447
      %v1587 = vpop.f32.mrf.mxu0
      %v1588 = vadd.f32 %v1472, %v1587
      %v1589 = vpop.f32.mrf.mxu0
      %v1590 = vpop.f32.mrf.mxu0
      %v1591 = vadd.f32 %v1472, %v1590
      %v1592 = vpop.f32.mrf.mxu0
      %1593 = vmatprep.mubr.bf16.mxu0 0
      %1594 = vmatmul.mubr.bf16.gmra.mxu0 %v1448
      %v1595 = vpop.f32.mrf.mxu0
      %v1596 = vadd.f32 %v1472, %v1595
      %v1597 = vpop.f32.mrf.mxu0
      %v1598 = vpop.f32.mrf.mxu0
      %v1599 = vadd.f32 %v1472, %v1598
      %v1600 = vpop.f32.mrf.mxu0
      %1601 = vmatprep.mubr.bf16.mxu0 0
      %1602 = vmatmul.mubr.bf16.gmra.mxu0 %v1449
      %v1603 = vpop.f32.mrf.mxu0
      %v1604 = vadd.f32 %v1472, %v1603
      %v1605 = vpop.f32.mrf.mxu0
      %v1606 = vpop.f32.mrf.mxu0
      %v1607 = vadd.f32 %v1472, %v1606
      %v1608 = vpop.f32.mrf.mxu0
      %1609 = vmatprep.mubr.bf16.mxu0 0
      %1610 = vmatmul.mubr.bf16.gmra.mxu0 %v1450
      %v1611 = vpop.f32.mrf.mxu0
      %v1612 = vadd.f32 %v1472, %v1611
      %v1613 = vpop.f32.mrf.mxu0
      %v1614 = vpop.f32.mrf.mxu0
      %v1615 = vadd.f32 %v1472, %v1614
      %v1616 = vpop.f32.mrf.mxu0
      %1617 = vdwg.mxu0
      %v1618 = vxor.u32 %v1556, 2147483648
      %v1619 = vxor.u32 %v1559, 2147483648
      %v1620 = vxor.u32 %v1564, 2147483648
      %v1621 = vxor.u32 %v1567, 2147483648
      %v1622 = vxor.u32 %v1572, 2147483648
      %v1623 = vxor.u32 %v1575, 2147483648
      %v1624 = vxor.u32 %v1580, 2147483648
      %v1625 = vxor.u32 %v1583, 2147483648
      %v1626 = vxor.u32 %v1588, 2147483648
      %v1627 = vxor.u32 %v1591, 2147483648
      %v1628 = vxor.u32 %v1596, 2147483648
      %v1629 = vxor.u32 %v1599, 2147483648
      %v1630 = vxor.u32 %v1604, 2147483648
      %v1631 = vxor.u32 %v1607, 2147483648
      %v1632 = vxor.u32 %v1612, 2147483648
      %v1633 = vxor.u32 %v1615, 2147483648
      %v1634 = vmul.f32 %v1618, 1.442695
      %v1635 = vpow.pop %v1634
      %v1636 = vmul.f32 %v1619, 1.442695
      %v1637 = vpow.pop %v1636
      %v1638 = vmul.f32 %v1620, 1.442695
      %v1639 = vpow.pop %v1638
      %v1640 = vmul.f32 %v1621, 1.442695
      %v1641 = vpow.pop %v1640
      %v1642 = vmul.f32 %v1622, 1.442695
      %v1643 = vpow.pop %v1642
      %v1644 = vmul.f32 %v1623, 1.442695
      %v1645 = vpow.pop %v1644
      %v1646 = vmul.f32 %v1624, 1.442695
      %v1647 = vpow.pop %v1646
      %v1648 = vmul.f32 %v1625, 1.442695
      %v1649 = vpow.pop %v1648
      %v1650 = vmul.f32 %v1626, 1.442695
      %v1651 = vpow.pop %v1650
      %v1652 = vmul.f32 %v1627, 1.442695
      %v1653 = vpow.pop %v1652
      %v1654 = vmul.f32 %v1628, 1.442695
      %v1655 = vpow.pop %v1654
      %v1656 = vmul.f32 %v1629, 1.442695
      %v1657 = vpow.pop %v1656
      %v1658 = vmul.f32 %v1630, 1.442695
      %v1659 = vpow.pop %v1658
      %v1660 = vmul.f32 %v1631, 1.442695
      %v1661 = vpow.pop %v1660
      %v1662 = vmul.f32 %v1632, 1.442695
      %v1663 = vpow.pop %v1662
      %v1664 = vmul.f32 %v1633, 1.442695
      %v1665 = vpow.pop %v1664
      %v1666 = vadd.f32 %v1635, 1.0
      %v1667 = vadd.f32 %v1637, 1.0
      %v1668 = vadd.f32 %v1639, 1.0
      %v1669 = vadd.f32 %v1641, 1.0
      %v1670 = vadd.f32 %v1643, 1.0
      %v1671 = vadd.f32 %v1645, 1.0
      %v1672 = vadd.f32 %v1647, 1.0
      %v1673 = vadd.f32 %v1649, 1.0
      %v1674 = vadd.f32 %v1651, 1.0
      %v1675 = vadd.f32 %v1653, 1.0
      %v1676 = vadd.f32 %v1655, 1.0
      %v1677 = vadd.f32 %v1657, 1.0
      %v1678 = vadd.f32 %v1659, 1.0
      %v1679 = vadd.f32 %v1661, 1.0
      %v1680 = vadd.f32 %v1663, 1.0
      %v1681 = vadd.f32 %v1665, 1.0
      %v1682 = vrcp.pop %v1666
      %v1683 = vmul.f32 1.0, %v1682
      %v1684 = vrcp.pop %v1667
      %v1685 = vmul.f32 1.0, %v1684
      %v1686 = vrcp.pop %v1668
      %v1687 = vmul.f32 1.0, %v1686
      %v1688 = vrcp.pop %v1669
      %v1689 = vmul.f32 1.0, %v1688
      %v1690 = vrcp.pop %v1670
      %v1691 = vmul.f32 1.0, %v1690
      %v1692 = vrcp.pop %v1671
      %v1693 = vmul.f32 1.0, %v1692
      %v1694 = vrcp.pop %v1672
      %v1695 = vmul.f32 1.0, %v1694
      %v1696 = vrcp.pop %v1673
      %v1697 = vmul.f32 1.0, %v1696
      %v1698 = vrcp.pop %v1674
      %v1699 = vmul.f32 1.0, %v1698
      %v1700 = vrcp.pop %v1675
      %v1701 = vmul.f32 1.0, %v1700
      %v1702 = vrcp.pop %v1676
      %v1703 = vmul.f32 1.0, %v1702
      %v1704 = vrcp.pop %v1677
      %v1705 = vmul.f32 1.0, %v1704
      %v1706 = vrcp.pop %v1678
      %v1707 = vmul.f32 1.0, %v1706
      %v1708 = vrcp.pop %v1679
      %v1709 = vmul.f32 1.0, %v1708
      %v1710 = vrcp.pop %v1680
      %v1711 = vmul.f32 1.0, %v1710
      %v1712 = vrcp.pop %v1681
      %v1713 = vmul.f32 1.0, %v1712
      %1714 = vst [vmem:[%s223] sm:$0xff] %v1683
      %1715 = vst [vmem:[%s223 + $0x18] sm:$0xff] %v1685
      %1716 = vst [vmem:[%s223 + $0x30] sm:$0xff] %v1687
      %1717 = vst [vmem:[%s223 + $0x48] sm:$0xff] %v1689
      %1718 = vst [vmem:[%s223 + $0x60] sm:$0xff] %v1691
      %1719 = vst [vmem:[%s223 + $0x78] sm:$0xff] %v1693
      %1720 = vst [vmem:[%s223 + $0x90] sm:$0xff] %v1695
      %1721 = vst [vmem:[%s223 + $0xa8] sm:$0xff] %v1697
      %1722 = vst [vmem:[%s223 + $0xc0] sm:$0xff] %v1699
      %1723 = vst [vmem:[%s223 + $0xd8] sm:$0xff] %v1701
      %1724 = vst [vmem:[%s223 + $0xf0] sm:$0xff] %v1703
      %1725 = vst [vmem:[%s223 + $0x108] sm:$0xff] %v1705
      %1726 = vst [vmem:[%s223 + $0x120] sm:$0xff] %v1707
      %1727 = vst [vmem:[%s223 + $0x138] sm:$0xff] %v1709
      %1728 = vst [vmem:[%s223 + $0x150] sm:$0xff] %v1711
      %1729 = vst [vmem:[%s223 + $0x168] sm:$0xff] %v1713
      %1730 = vst [vmem:[%s223 + $0x8] sm:$0xff] %v752
      %1731 = vst [vmem:[%s223 + $0x20] sm:$0xff] %v755
      %1732 = vst [vmem:[%s223 + $0x38] sm:$0xff] %v760
      %1733 = vst [vmem:[%s223 + $0x50] sm:$0xff] %v763
      %1734 = vst [vmem:[%s223 + $0x68] sm:$0xff] %v768
      %1735 = vst [vmem:[%s223 + $0x80] sm:$0xff] %v771
      %1736 = vst [vmem:[%s223 + $0x98] sm:$0xff] %v776
      %1737 = vst [vmem:[%s223 + $0xb0] sm:$0xff] %v779
      %1738 = vst [vmem:[%s223 + $0xc8] sm:$0xff] %v784
      %1739 = vst [vmem:[%s223 + $0xe0] sm:$0xff] %v787
      %1740 = vst [vmem:[%s223 + $0xf8] sm:$0xff] %v792
      %1741 = vst [vmem:[%s223 + $0x110] sm:$0xff] %v795
      %1742 = vst [vmem:[%s223 + $0x128] sm:$0xff] %v800
      %1743 = vst [vmem:[%s223 + $0x140] sm:$0xff] %v803
      %1744 = vst [vmem:[%s223 + $0x158] sm:$0xff] %v808
      %1745 = vst [vmem:[%s223 + $0x170] sm:$0xff] %v811
      %1746 = vst [vmem:[%s223 + $0x10] sm:$0xff] %v919
      %1747 = vst [vmem:[%s223 + $0x28] sm:$0xff] %v922
      %1748 = vst [vmem:[%s223 + $0x40] sm:$0xff] %v927
      %1749 = vst [vmem:[%s223 + $0x58] sm:$0xff] %v930
      %1750 = vst [vmem:[%s223 + $0x70] sm:$0xff] %v935
      %1751 = vst [vmem:[%s223 + $0x88] sm:$0xff] %v938
      %1752 = vst [vmem:[%s223 + $0xa0] sm:$0xff] %v943
      %1753 = vst [vmem:[%s223 + $0xb8] sm:$0xff] %v946
      %1754 = vst [vmem:[%s223 + $0xd0] sm:$0xff] %v951
      %1755 = vst [vmem:[%s223 + $0xe8] sm:$0xff] %v954
      %1756 = vst [vmem:[%s223 + $0x100] sm:$0xff] %v959
      %1757 = vst [vmem:[%s223 + $0x118] sm:$0xff] %v962
      %1758 = vst [vmem:[%s223 + $0x130] sm:$0xff] %v967
      %1759 = vst [vmem:[%s223 + $0x148] sm:$0xff] %v970
      %1760 = vst [vmem:[%s223 + $0x160] sm:$0xff] %v975
      %1761 = vst [vmem:[%s223 + $0x178] sm:$0xff] %v978
      %s1762 = smul.u32 16, %s15
      %p1763 = scmp.lt.s32.totalorder %s1762, 31
      %s1764 = scalar_select %p1763, %s1762, 31
      %s1765 = smul.addr %s1764, 3
      %s1766 = smul.addr %s1765, 8
      %s1767 = scalar_lea.vmem %s4, %s1766
      // Predicated region
      $region37: #{vae_forward.1} parent=35 // pred_check
        %p1768 = pneg %p127
      $region38: #{vae_forward.1} parent=35 // pred_check_branch
        %1770 = sbr.rel (%p1768) target = $region40
      $region39: #{vae_forward.1} parent=35 // pred_region
        %s1771 = smul.u32 16, %s15
      $region40: #{vae_forward.1} parent=35 // pred_fallthru
        _
    $region36: #{vae_forward.1} parent=5 // pred_fallthru
      _
    %p1772 = scmp.le.s32.totalorder 2, %s10
    // Predicated region
    $region41: #{vae_forward.1} parent=5 // pred_check
      %p1773 = pneg %p1772
    $region42: #{vae_forward.1} parent=5 // pred_check_branch
      %1775 = sbr.rel (%p1773) target = $region44
    $region43: #{vae_forward.1} parent=5 // pred_region
      %s1776 = ssub.s32 %s10, 2
      // Predicated region
      $region45: #{vae_forward.1} parent=43 // pred_check
        %p1777 = pneg %p133
      $region46: #{vae_forward.1} parent=43 // pred_check_branch
        %1779 = sbr.rel (%p1777) target = $region48
      $region47: #{vae_forward.1} parent=43 // pred_region
        %s1780 = smul.u32 16, %s16
        %p1781 = scmp.lt.s32.totalorder %s1780, 31
        %s1782 = scalar_select %p1781, %s1780, 31
        %s1783 = smul.addr %s1782, 3
        %s1784 = smul.addr %s1783, 8
        %s1785 = scalar_lea.vmem %s4, %s1784
      $region48: #{vae_forward.1} parent=43 // pred_fallthru
        _
    $region44: #{vae_forward.1} parent=5 // pred_fallthru
      _
  $region6: #{vae_forward.1} parent=0 // loop_footer
    %s14 = sadd.s32 1, %s10
  $region7: #{vae_forward.1} parent=0 // loop_footer_branch
    %9 = sbr.rel target = $region3
  $region8: #{vae_forward.1} parent=0 // loop_exit
    _

</llo_original>
